<compile_context>
chip_gen: v7x
topology: tpu7x:2x2x1
jax: 0.10.0
libtpu: 0.0.40
codegen_flags: <defaults>
</compile_context>

<pallas_src>
import jax
import jax.numpy as jnp
import numpy as np
from jax.experimental import pallas as pl
from jax.experimental.pallas import tpu as pltpu

EPSILON = 1e-9
LOG_EPSILON = float(np.log(EPSILON))


def _round_up(x, m):
    return ((x + m - 1) // m) * m


def _log_sigmoid(x):
    # Numerically stable log(sigmoid(x)): min(x,0) - log(1 + exp(-|x|)).
    # Equals the reference up to fp rounding for non-extreme logits and is
    # clamped at log(EPSILON) below.
    return jnp.minimum(x, 0.0) - jnp.log(1.0 + jnp.exp(-jnp.abs(x)))


def _nsl_kernel(doc_ref, pivot_ref, tgt_ref, neg_ref, out_ref):
    """Per-batch-tile negative-sampling partial sums.

    doc_ref   : [TB, D]      f32  document vectors
    pivot_ref : [TB, D]      f32  gathered pivot-word vectors
    tgt_ref   : [TB, W,  D]  bf16 gathered target-word vectors
    neg_ref   : [TB, WS, D]  bf16 gathered negative-sample vectors (WS = W*S)
    out_ref   : [TB, 1]      f32  per-doc sum of clamped log-sigmoids
    """
    # context = dropout(doc) + dropout(pivot)   (eval mode -> identity)
    context = doc_ref[...] + pivot_ref[...]                   # [TB, D] f32
    ctx3 = context.astype(tgt_ref.dtype)[:, None, :]           # [TB, 1, D] bf16

    # MXU batched contractions over D (f32 accumulation).
    pos = jnp.einsum("bqd,bnd->bqn", ctx3, tgt_ref[...],
                     preferred_element_type=jnp.float32)[:, 0, :]   # [TB, W]
    neg = jnp.einsum("bqd,bnd->bqn", ctx3, neg_ref[...],
                     preferred_element_type=jnp.float32)[:, 0, :]   # [TB, WS]

    # Reference: sigmoid(+dot) for targets, sigmoid(-dot) for negatives.
    # log(clamp(sigmoid(x), EPS)) == max(log_sigmoid(x), log(EPS)).
    log_pos = jnp.maximum(_log_sigmoid(pos), LOG_EPSILON)
    log_neg = jnp.maximum(_log_sigmoid(-neg), LOG_EPSILON)

    out_ref[...] = (jnp.sum(log_pos, axis=1, keepdims=True) +
                    jnp.sum(log_neg, axis=1, keepdims=True))          # [TB, 1]


def negative_sampling_loss_pallas(pivot_words, target_words, doc_vectors,
                                  loss_doc_weights, word_vectors, noise_idx,
                                  *, block_b=128, vmem_limit_bytes=None):
    """noise_idx: pre-drawn negative-sample indices of shape [B, W*S].

    Tile sizing: per batch row the kernel moves roughly (W + W*S) * D * 2
    bytes of bf16, double-buffered, so:
      - v7x (64 MiB VMEM):  keep block_b <= 256
      - v6e/v5e (128 MiB):  block_b 256-512 is fine; raise vmem_limit_bytes
        (e.g. 64 MiB) when going above the default scoped limit.
    """
    B, W = target_words.shape
    D = word_vectors.shape[1]
    WS = noise_idx.shape[1]

    # ---- glue: embedding gathers (outside the kernel) ----------------------
    pivot_vecs = jnp.take(word_vectors, pivot_words, axis=0).astype(jnp.float32)
    target_vecs = jnp.take(word_vectors, target_words, axis=0).astype(jnp.bfloat16)
    noise_vecs = jnp.take(word_vectors, noise_idx, axis=0).astype(jnp.bfloat16)
    doc_f32 = doc_vectors.astype(jnp.float32)

    # ---- batch tiling ------------------------------------------------------
    TB = _round_up(min(block_b, _round_up(B, 8)), 8)
    B_pad = _round_up(B, TB)
    if B_pad != B:
        pad = B_pad - B
        doc_f32 = jnp.pad(doc_f32, ((0, pad), (0, 0)))
        pivot_vecs = jnp.pad(pivot_vecs, ((0, pad), (0, 0)))
        target_vecs = jnp.pad(target_vecs, ((0, pad), (0, 0), (0, 0)))
        noise_vecs = jnp.pad(noise_vecs, ((0, pad), (0, 0), (0, 0)))
    grid = (B_pad // TB,)

    flops = 2 * B_pad * (W + WS) * D + 4 * B_pad * D
    transcendentals = 2 * B_pad * (W + WS)          # exp + log per logit
    bytes_accessed = ((doc_f32.size + pivot_vecs.size) * 4
                      + (target_vecs.size + noise_vecs.size) * 2
                      + B_pad * 4)

    per_doc = pl.pallas_call(
        _nsl_kernel,
        out_shape=jax.ShapeDtypeStruct((B_pad, 1), jnp.float32),
        grid_spec=pltpu.PrefetchScalarGridSpec(
            num_scalar_prefetch=0,
            grid=grid,
            in_specs=[
                pl.BlockSpec((TB, D), lambda i: (i, 0)),
                pl.BlockSpec((TB, D), lambda i: (i, 0)),
                pl.BlockSpec((TB, W, D), lambda i: (i, 0, 0)),
                pl.BlockSpec((TB, WS, D), lambda i: (i, 0, 0)),
            ],
            out_specs=pl.BlockSpec((TB, 1), lambda i: (i, 0)),
        ),
        compiler_params=pltpu.CompilerParams(
            dimension_semantics=("parallel",),
            vmem_limit_bytes=vmem_limit_bytes),
        cost_estimate=pl.CostEstimate(flops=int(flops),
                                      transcendentals=int(transcendentals),
                                      bytes_accessed=int(bytes_accessed)),
    )(doc_f32, pivot_vecs, target_vecs, noise_vecs)

    # ---- weighted mean finished in the wrapper -----------------------------
    per_doc = per_doc[:B, 0]
    return -jnp.mean(loss_doc_weights.astype(jnp.float32) * per_doc)


def negative_sampling_loss_ref(pivot_words, target_words, doc_vectors,
                               loss_doc_weights, word_vectors, noise_idx,
                               num_sampled):
    """Pure-JAX f32 reference mirroring the PyTorch forward (eval-mode dropout)."""
    B, W = target_words.shape
    pivot = jnp.take(word_vectors, pivot_words, axis=0)
    context = doc_vectors + pivot
    targets = jnp.take(word_vectors, target_words, axis=0)
    log_targets = jnp.log(jnp.clip(
        jax.nn.sigmoid(jnp.sum(targets * context[:, None, :], axis=2)), EPSILON))
    noise = jnp.take(word_vectors, noise_idx, axis=0).reshape(
        B, W, num_sampled, -1)
    sum_log_sampled = jnp.sum(jnp.log(jnp.clip(
        jax.nn.sigmoid(-jnp.sum(noise * context[:, None, None, :], axis=3)),
        EPSILON)), axis=2)
    neg_loss = log_targets + sum_log_sampled
    return -jnp.mean(loss_doc_weights * jnp.sum(neg_loss, axis=1))


if __name__ == "__main__":
    key = jax.random.PRNGKey(0)
    k_wv, k_dist, k_piv, k_tgt, k_doc, k_w, k_noise = jax.random.split(key, 7)

    vocab_size = 64
    embedding_dim = 128
    batch_size = 16
    window_size = 8
    num_sampled = 10

    # Deterministic "checkpoint": word vectors + word distribution.
    word_vectors = 0.1 * jax.random.normal(
        k_wv, (vocab_size, embedding_dim), dtype=jnp.float32)
    word_distribution = jax.random.uniform(k_dist, (vocab_size,)) + 0.1
    word_distribution = word_distribution / jnp.sum(word_distribution)

    # Forward inputs.
    pivot_words = jax.random.randint(k_piv, (batch_size,), 0, vocab_size)
    target_words = jax.random.randint(
        k_tgt, (batch_size, window_size), 0, vocab_size)
    doc_vectors = 0.1 * jax.random.normal(
        k_doc, (batch_size, embedding_dim), dtype=jnp.float32)
    loss_doc_weights = jax.random.uniform(k_w, (batch_size,), dtype=jnp.float32)

    # AliasMultinomial.draw equivalent: sample negatives from word_distribution.
    noise_idx = jax.random.categorical(
        k_noise, jnp.log(word_distribution),
        shape=(batch_size, window_size * num_sampled))

    # block_b=8 -> 2 grid steps at this toy batch, exercising the tiled path.
    loss = negative_sampling_loss_pallas(
        pivot_words, target_words, doc_vectors, loss_doc_weights,
        word_vectors, noise_idx, block_b=8)
    loss = jax.block_until_ready(loss)

    ref = negative_sampling_loss_ref(
        pivot_words, target_words, doc_vectors, loss_doc_weights,
        word_vectors, noise_idx, num_sampled)
    ref = jax.block_until_ready(ref)

    # bf16 MXU operands vs f32 reference -> slightly looser tolerance.
    np.testing.assert_allclose(np.asarray(loss), np.asarray(ref),
                               rtol=2e-3, atol=2e-3)
    print("KERNEL_OK")
</pallas_src>

<mosaic_0001>
module attributes {stable_mosaic.version = 11 : i64} {
  func.func @_nsl_kernel(%arg0: i32, %arg1: memref<8x128xf32, #tpu.memory_space<vmem>>, %arg2: memref<8x128xf32, #tpu.memory_space<vmem>>, %arg3: memref<8x8x128xbf16, #tpu.memory_space<vmem>>, %arg4: memref<8x80x128xbf16, #tpu.memory_space<vmem>>, %arg5: memref<8x1xf32, #tpu.memory_space<vmem>>) attributes {dimension_semantics = [#tpu.dimension_semantics<parallel>], iteration_bounds = array<i64: 2>, scalar_prefetch = 0 : i64, scratch_operands = 0 : i64, tpu.core_type = #tpu.core_type<tc>, window_params = [{transform_indices = @transform_0, window_bounds = array<i64: 8, 128>}, {transform_indices = @transform_1, window_bounds = array<i64: 8, 128>}, {transform_indices = @transform_2, window_bounds = array<i64: 8, 8, 128>}, {transform_indices = @transform_3, window_bounds = array<i64: 8, 80, 128>}, {transform_indices = @transform_4, window_bounds = array<i64: 8, 1>}]} {
    %c0 = arith.constant 0 : index
    %c0_0 = arith.constant 0 : index
    %0 = vector.load %arg1[%c0, %c0_0] : memref<8x128xf32, #tpu.memory_space<vmem>>, vector<8x128xf32>
    %c0_1 = arith.constant 0 : index
    %c0_2 = arith.constant 0 : index
    %1 = vector.load %arg2[%c0_1, %c0_2] : memref<8x128xf32, #tpu.memory_space<vmem>>, vector<8x128xf32>
    %2 = arith.addf %0, %1 : vector<8x128xf32>
    %3 = arith.truncf %2 : vector<8x128xf32> to vector<8x128xbf16>
    %4 = vector.shape_cast %3 : vector<8x128xbf16> to vector<8x1x128xbf16>
    %c0_3 = arith.constant 0 : index
    %c0_4 = arith.constant 0 : index
    %c0_5 = arith.constant 0 : index
    %5 = vector.load %arg3[%c0_3, %c0_4, %c0_5] : memref<8x8x128xbf16, #tpu.memory_space<vmem>>, vector<8x8x128xbf16>
    "tpu.trace_start"() <{level = 10 : i32, message = "bqd,bnd->bqn"}> : () -> ()
    %cst = arith.constant dense<0.000000e+00> : vector<8x1x8xf32>
    %6 = tpu.matmul %4, %5, %cst {dimension_numbers = #tpu.dot_dimension_numbers<[2], [2], [1], [1], [0, 0, 0, 1, 1, 1], [0], [0]>} : vector<8x1x128xbf16>, vector<8x8x128xbf16>, vector<8x1x8xf32> -> vector<8x1x8xf32>
    "tpu.trace_stop"() : () -> ()
    %7 = vector.shape_cast %6 : vector<8x1x8xf32> to vector<8x8xf32>
    %c0_6 = arith.constant 0 : index
    %c0_7 = arith.constant 0 : index
    %c0_8 = arith.constant 0 : index
    %8 = vector.load %arg4[%c0_6, %c0_7, %c0_8] : memref<8x80x128xbf16, #tpu.memory_space<vmem>>, vector<8x80x128xbf16>
    "tpu.trace_start"() <{level = 10 : i32, message = "bqd,bnd->bqn"}> : () -> ()
    %cst_9 = arith.constant dense<0.000000e+00> : vector<8x1x80xf32>
    %9 = tpu.matmul %4, %8, %cst_9 {dimension_numbers = #tpu.dot_dimension_numbers<[2], [2], [1], [1], [0, 0, 0, 1, 1, 1], [0], [0]>} : vector<8x1x128xbf16>, vector<8x80x128xbf16>, vector<8x1x80xf32> -> vector<8x1x80xf32>
    "tpu.trace_stop"() : () -> ()
    %10 = vector.shape_cast %9 : vector<8x1x80xf32> to vector<8x80xf32>
    %cst_10 = arith.constant 0.000000e+00 : f32
    %11 = vector.broadcast %cst_10 : f32 to vector<8x8xf32>
    %12 = arith.minimumf %7, %11 : vector<8x8xf32>
    %13 = math.absf %7 : vector<8x8xf32>
    %cst_11 = arith.constant 0.000000e+00 : f32
    %14 = vector.broadcast %cst_11 : f32 to vector<8x8xf32>
    %15 = arith.subf %14, %13 : vector<8x8xf32>
    %16 = math.exp %15 : vector<8x8xf32>
    %cst_12 = arith.constant 1.000000e+00 : f32
    %17 = vector.broadcast %cst_12 : f32 to vector<8x8xf32>
    %18 = arith.addf %17, %16 : vector<8x8xf32>
    %19 = math.log %18 : vector<8x8xf32>
    %20 = arith.subf %12, %19 : vector<8x8xf32>
    %cst_13 = arith.constant -20.7232666 : f32
    %21 = vector.broadcast %cst_13 : f32 to vector<8x8xf32>
    %22 = arith.maximumf %20, %21 : vector<8x8xf32>
    %cst_14 = arith.constant 0.000000e+00 : f32
    %23 = vector.broadcast %cst_14 : f32 to vector<8x80xf32>
    %24 = arith.subf %23, %10 : vector<8x80xf32>
    %cst_15 = arith.constant 0.000000e+00 : f32
    %25 = vector.broadcast %cst_15 : f32 to vector<8x80xf32>
    %26 = arith.minimumf %24, %25 : vector<8x80xf32>
    %27 = math.absf %24 : vector<8x80xf32>
    %cst_16 = arith.constant 0.000000e+00 : f32
    %28 = vector.broadcast %cst_16 : f32 to vector<8x80xf32>
    %29 = arith.subf %28, %27 : vector<8x80xf32>
    %30 = math.exp %29 : vector<8x80xf32>
    %cst_17 = arith.constant 1.000000e+00 : f32
    %31 = vector.broadcast %cst_17 : f32 to vector<8x80xf32>
    %32 = arith.addf %31, %30 : vector<8x80xf32>
    %33 = math.log %32 : vector<8x80xf32>
    %34 = arith.subf %26, %33 : vector<8x80xf32>
    %cst_18 = arith.constant -20.7232666 : f32
    %35 = vector.broadcast %cst_18 : f32 to vector<8x80xf32>
    %36 = arith.maximumf %34, %35 : vector<8x80xf32>
    %cst_19 = arith.constant dense<0.000000e+00> : vector<8xf32>
    %37 = vector.multi_reduction <add>, %22, %cst_19 [1] : vector<8x8xf32> to vector<8xf32>
    %38 = vector.shape_cast %37 : vector<8xf32> to vector<8x1xf32>
    %cst_20 = arith.constant dense<0.000000e+00> : vector<8xf32>
    %39 = vector.multi_reduction <add>, %36, %cst_20 [1] : vector<8x80xf32> to vector<8xf32>
    %40 = vector.shape_cast %39 : vector<8xf32> to vector<8x1xf32>
    %41 = arith.addf %38, %40 : vector<8x1xf32>
    %c0_21 = arith.constant 0 : index
    %c0_22 = arith.constant 0 : index
    %42 = vector.load %arg5[%c0_21, %c0_22] : memref<8x1xf32, #tpu.memory_space<vmem>>, vector<8x1xf32>
    tpu.vector_store %arg5[%c0_21, %c0_22], %41 {strides = array<i32>} : memref<8x1xf32, #tpu.memory_space<vmem>>, vector<8x1xf32>,
    return
  }
  func.func @transform_0(%arg0: i32) -> (i32, i32) {
    %c0_i32 = arith.constant 0 : i32
    %c0_i32_0 = arith.constant 0 : i32
    return %arg0, %c0_i32 : i32, i32
  }
  func.func @transform_1(%arg0: i32) -> (i32, i32) {
    %c0_i32 = arith.constant 0 : i32
    %c0_i32_0 = arith.constant 0 : i32
    return %arg0, %c0_i32 : i32, i32
  }
  func.func @transform_2(%arg0: i32) -> (i32, i32, i32) {
    %c0_i32 = arith.constant 0 : i32
    %c0_i32_0 = arith.constant 0 : i32
    %c0_i32_1 = arith.constant 0 : i32
    return %arg0, %c0_i32, %c0_i32_0 : i32, i32, i32
  }
  func.func @transform_3(%arg0: i32) -> (i32, i32, i32) {
    %c0_i32 = arith.constant 0 : i32
    %c0_i32_0 = arith.constant 0 : i32
    %c0_i32_1 = arith.constant 0 : i32
    return %arg0, %c0_i32, %c0_i32_0 : i32, i32, i32
  }
  func.func @transform_4(%arg0: i32) -> (i32, i32) {
    %c0_i32 = arith.constant 0 : i32
    %c0_i32_0 = arith.constant 0 : i32
    return %arg0, %c0_i32 : i32, i32
  }
}

</mosaic_0001>

<llo_original>
// kernel: tpu_custom_call.1
$region0: #{tpu_custom_call.1}
  #allocation0 [shape = 'u32[]', space=smem, size = 0x4, offset = 0x4, fixed_abs, tag = 'smem constant byte address 0x4 - core index']
  #allocation1 [shape = 'u32[144,128]{1,0:T(1,128)}', space=vmem, size = 0x12000, scoped, tag = 'internal scratch']
  %s0 = inlined_call_operand.hbm [shape: f32[16,128], index: 0, kind: input, shape index: {}]
  %s1 = inlined_call_operand.hbm [shape: f32[16,128], index: 1, kind: input, shape index: {}]
  %s2 = inlined_call_operand.hbm [shape: bf16[16,8,128], index: 2, kind: input, shape index: {}]
  %s3 = inlined_call_operand.hbm [shape: bf16[16,80,128], index: 3, kind: input, shape index: {}]
  %s4 = inlined_call_operand.vmem [shape: f32[16,1], index: 4, kind: output, shape index: {}]
  %s5 = sld [smem:[#allocation0]]
  $region65: #{tpu_custom_call.1} parent=0
    _
  %s7 = ssub.s32 1, %s5
  %s8 = scalar_select 0, %s7, %s5
  $region1: #{tpu_custom_call.1} parent=0
    #allocation2 [shape = 'u8[8192]{0}', space=vmem, size = 0x2000, scoped, tag = 'input window, operand 0']
    #allocation3 [shape = 's32[2]{0}', space=sflag, size = 0x8, scoped, tag = 'scoped memory for tpu_custom_call.1']
    #allocation4 [shape = 'u8[8192]{0}', space=vmem, size = 0x2000, scoped, tag = 'input window, operand 1']
    #allocation5 [shape = 's32[2]{0}', space=sflag, size = 0x8, scoped, tag = 'scoped memory for tpu_custom_call.1']
    #allocation6 [shape = 'u8[32768]{0}', space=vmem, size = 0x8000, scoped, tag = 'input window, operand 2']
    #allocation7 [shape = 'u8[327680]{0}', space=vmem, size = 0x50000, scoped, tag = 'input window, operand 3']
    #allocation8 [shape = 's32[2]{0}', space=sflag, size = 0x8, scoped, tag = 'scoped memory for tpu_custom_call.1']
    %9 = vsyncpa [#allocation3], 0
    %s10 = scalar_lea.sflag [#allocation3], 1
    %11 = vsyncpa %s10, 0
    %12 = vsyncpa [#allocation5], 0
    %s13 = scalar_lea.sflag [#allocation5], 1
    %14 = vsyncpa %s13, 0
    %15 = vsyncpa [#allocation8], 0
    %s16 = scalar_lea.sflag [#allocation8], 1
    %17 = vsyncpa %s16, 0
    loop: start=0, step=1, limit=4
    $region2: #{tpu_custom_call.1} parent=1 // loop_pre_header
      _
    $region3: #{tpu_custom_call.1} parent=1 // loop_header
      %s19 = sphi 0, %s23
      %p20 = scmp.ge.s32.totalorder %s19, 4
      %s29 = sphi 0, %s31
      %s32 = sphi 0, %s29
      %s33 = sphi 0, %s32
      %s49 = sphi 0, %s33
      %s55 = sphi 0, %s57
      %s58 = sphi 0, %s55
      %s59 = sphi 0, %s58
      %s75 = sphi 0, %s59
      %s81 = sphi 0, %s83
      %s84 = sphi 0, %s81
      %s85 = sphi 0, %s84
      %s101 = sphi 0, %s85
      %s107 = sphi 0, %s109
      %s110 = sphi 0, %s107
      %s111 = sphi 0, %s110
      %s127 = sphi 0, %s111
      %s133 = sphi 0, %s135
      %s136 = sphi 0, %s133
      %s137 = sphi 0, %s136
      %s153 = sphi 0, %s137
    $region4: #{tpu_custom_call.1} parent=1 // loop_header_branch
      %22 = sbr.rel (%p20) target = $region8
    $region5: #{tpu_custom_call.1} parent=1 // loop_body
      %s24 = ssub.s32 %s19, 1
      %s25 = ssub.s32 %s19, 2
      %s26 = sadd.s32 %s19, 1
      %s27 = ssub.s32 %s19, %s26
      %p28 = scmp.eq.s32.totalorder %s27, 0
      %s30 = sadd.s32 %s29, 1
      %s31 = scalar_select %p28, %s29, %s30
      %p34 = pneg %p28
      %p35 = scmp.eq.s32.totalorder %s19, 1
      %p36 = por %p34, %p35
      %p37 = scmp.ne.s32.totalorder %s29, %s32
      %p38 = scmp.eq.s32.totalorder %s19, 0
      %p39 = por %p37, %p38
      %p40 = scmp.ne.s32.totalorder %s29, %s32
      %p41 = scmp.eq.s32.totalorder %s24, 1
      %p42 = por %p40, %p41
      %p43 = scmp.ne.s32.totalorder %s32, %s33
      %p44 = scmp.eq.s32.totalorder %s24, 0
      %p45 = por %p43, %p44
      %p46 = scmp.ne.s32.totalorder %s32, %s33
      %p47 = scmp.eq.s32.totalorder %s25, 1
      %p48 = por %p46, %p47
      %p50 = scmp.ne.s32.totalorder %s33, %s49
      %p51 = scmp.eq.s32.totalorder %s25, 0
      %p52 = por %p50, %p51
      %s53 = ssub.s32 %s19, %s26
      %p54 = scmp.eq.s32.totalorder %s53, 0
      %s56 = sadd.s32 %s55, 1
      %s57 = scalar_select %p54, %s55, %s56
      %p60 = pneg %p54
      %p61 = scmp.eq.s32.totalorder %s19, 1
      %p62 = por %p60, %p61
      %p63 = scmp.ne.s32.totalorder %s55, %s58
      %p64 = scmp.eq.s32.totalorder %s19, 0
      %p65 = por %p63, %p64
      %p66 = scmp.ne.s32.totalorder %s55, %s58
      %p67 = scmp.eq.s32.totalorder %s24, 1
      %p68 = por %p66, %p67
      %p69 = scmp.ne.s32.totalorder %s58, %s59
      %p70 = scmp.eq.s32.totalorder %s24, 0
      %p71 = por %p69, %p70
      %p72 = scmp.ne.s32.totalorder %s58, %s59
      %p73 = scmp.eq.s32.totalorder %s25, 1
      %p74 = por %p72, %p73
      %p76 = scmp.ne.s32.totalorder %s59, %s75
      %p77 = scmp.eq.s32.totalorder %s25, 0
      %p78 = por %p76, %p77
      %s79 = ssub.s32 %s19, %s26
      %p80 = scmp.eq.s32.totalorder %s79, 0
      %s82 = sadd.s32 %s81, 1
      %s83 = scalar_select %p80, %s81, %s82
      %p86 = pneg %p80
      %p87 = scmp.eq.s32.totalorder %s19, 1
      %p88 = por %p86, %p87
      %p89 = scmp.ne.s32.totalorder %s81, %s84
      %p90 = scmp.eq.s32.totalorder %s19, 0
      %p91 = por %p89, %p90
      %p92 = scmp.ne.s32.totalorder %s81, %s84
      %p93 = scmp.eq.s32.totalorder %s24, 1
      %p94 = por %p92, %p93
      %p95 = scmp.ne.s32.totalorder %s84, %s85
      %p96 = scmp.eq.s32.totalorder %s24, 0
      %p97 = por %p95, %p96
      %p98 = scmp.ne.s32.totalorder %s84, %s85
      %p99 = scmp.eq.s32.totalorder %s25, 1
      %p100 = por %p98, %p99
      %p102 = scmp.ne.s32.totalorder %s85, %s101
      %p103 = scmp.eq.s32.totalorder %s25, 0
      %p104 = por %p102, %p103
      %s105 = ssub.s32 %s19, %s26
      %p106 = scmp.eq.s32.totalorder %s105, 0
      %s108 = sadd.s32 %s107, 1
      %s109 = scalar_select %p106, %s107, %s108
      %p112 = pneg %p106
      %p113 = scmp.eq.s32.totalorder %s19, 1
      %p114 = por %p112, %p113
      %p115 = scmp.ne.s32.totalorder %s107, %s110
      %p116 = scmp.eq.s32.totalorder %s19, 0
      %p117 = por %p115, %p116
      %p118 = scmp.ne.s32.totalorder %s107, %s110
      %p119 = scmp.eq.s32.totalorder %s24, 1
      %p120 = por %p118, %p119
      %p121 = scmp.ne.s32.totalorder %s110, %s111
      %p122 = scmp.eq.s32.totalorder %s24, 0
      %p123 = por %p121, %p122
      %p124 = scmp.ne.s32.totalorder %s110, %s111
      %p125 = scmp.eq.s32.totalorder %s25, 1
      %p126 = por %p124, %p125
      %p128 = scmp.ne.s32.totalorder %s111, %s127
      %p129 = scmp.eq.s32.totalorder %s25, 0
      %p130 = por %p128, %p129
      %s131 = ssub.s32 %s19, %s26
      %p132 = scmp.eq.s32.totalorder %s131, 0
      %s134 = sadd.s32 %s133, 1
      %s135 = scalar_select %p132, %s133, %s134
      %p138 = pneg %p132
      %p139 = scmp.eq.s32.totalorder %s19, 1
      %p140 = por %p138, %p139
      %p141 = scmp.ne.s32.totalorder %s133, %s136
      %p142 = scmp.eq.s32.totalorder %s19, 0
      %p143 = por %p141, %p142
      %p144 = scmp.ne.s32.totalorder %s133, %s136
      %p145 = scmp.eq.s32.totalorder %s24, 1
      %p146 = por %p144, %p145
      %p147 = scmp.ne.s32.totalorder %s136, %s137
      %p148 = scmp.eq.s32.totalorder %s24, 0
      %p149 = por %p147, %p148
      %p150 = scmp.ne.s32.totalorder %s136, %s137
      %p151 = scmp.eq.s32.totalorder %s25, 1
      %p152 = por %p150, %p151
      %p154 = scmp.ne.s32.totalorder %s137, %s153
      %p155 = scmp.eq.s32.totalorder %s25, 0
      %p156 = por %p154, %p155
      %p157 = scmp.le.s32.totalorder 1, %s19
      %p158 = scmp.lt.s32.totalorder %s19, 3
      %p159 = pnand %p157, %p158
      %p160 = pneg %p159
      // Predicated region
      $region9: #{tpu_custom_call.1} parent=5 // pred_check
        _
      $region10: #{tpu_custom_call.1} parent=5 // pred_check_branch
        %162 = sbr.rel (%p159) target = $region12
      $region11: #{tpu_custom_call.1} parent=5 // pred_region
        %s163 = ssub.s32 %s19, 1
      $region12: #{tpu_custom_call.1} parent=5 // pred_fallthru
        _
      %p164 = scmp.lt.s32.totalorder %s19, 2
      // Predicated region
      $region13: #{tpu_custom_call.1} parent=5 // pred_check
        %p165 = pneg %p164
      $region14: #{tpu_custom_call.1} parent=5 // pred_check_branch
        %167 = sbr.rel (%p165) target = $region16
      $region15: #{tpu_custom_call.1} parent=5 // pred_region
        // Predicated region
        $region17: #{tpu_custom_call.1} parent=15 // pred_check
          %p168 = pneg %p39
        $region18: #{tpu_custom_call.1} parent=15 // pred_check_branch
          %170 = sbr.rel (%p168) target = $region20
        $region19: #{tpu_custom_call.1} parent=15 // pred_region
          %s171 = sand.u32 %s29, 1
          %s172 = scalar_lea.sflag [#allocation3], %s171
          %s173 = sand.u32 %s29, 1
          %s174 = smul.addr %s173, 8
          %s175 = scalar_lea.vmem [#allocation2], %s174
          %s177 = ssub.s32 128, 128
          %178 = vsyncadd %s172, %s177
          %s179 = smul.addr %s19, 128
          %s180 = scalar_lea.hbm %s0, %s179
          %s182 = sshll.u32 %s175, 4
          %s183 = int_to_ptr.vmem [resolvable:$true] %s182
          %185 = dma.hbm_to_vmem [thread:$0]  %s180, 128, %s183, %s172
        $region20: #{tpu_custom_call.1} parent=15 // pred_fallthru
          _
        // Predicated region
        $region21: #{tpu_custom_call.1} parent=15 // pred_check
          %p186 = pneg %p65
        $region22: #{tpu_custom_call.1} parent=15 // pred_check_branch
          %188 = sbr.rel (%p186) target = $region24
        $region23: #{tpu_custom_call.1} parent=15 // pred_region
          %s189 = sand.u32 %s19, 1
          %s190 = scalar_lea.sflag [#allocation5], %s189
          %s191 = sand.u32 %s55, 1
          %s192 = smul.addr %s191, 8
          %s193 = scalar_lea.vmem [#allocation4], %s192
          %s195 = ssub.s32 128, 128
          %196 = vsyncadd %s190, %s195
          %s197 = smul.addr %s19, 128
          %s198 = scalar_lea.hbm %s1, %s197
          %s200 = sshll.u32 %s193, 4
          %s201 = int_to_ptr.vmem [resolvable:$true] %s200
          %203 = dma.hbm_to_vmem [thread:$0]  %s198, 128, %s201, %s190
        $region24: #{tpu_custom_call.1} parent=15 // pred_fallthru
          _
        // Predicated region
        $region25: #{tpu_custom_call.1} parent=15 // pred_check
          %p204 = pneg %p91
        $region26: #{tpu_custom_call.1} parent=15 // pred_check_branch
          %206 = sbr.rel (%p204) target = $region28
        $region27: #{tpu_custom_call.1} parent=15 // pred_region
          %s207 = sand.u32 %s19, 1
          %s208 = scalar_lea.sflag [#allocation5], %s207
          %s209 = sand.u32 %s81, 1
          %s210 = smul.addr %s209, 32
          %s211 = scalar_lea.vmem [#allocation6], %s210
          %s212 = smul.u32 8, %s19
          %s214 = ssub.s32 512, 512
          %215 = vsyncadd %s208, %s214
          %s216 = smul.addr %s212, 64
          %s217 = scalar_lea.hbm %s2, %s216
          %s218 = sshll.u32 %s211, 4
          %s219 = int_to_ptr.vmem [resolvable:$true] %s218
          %224 = dma.hbm_to_vmem [thread:$0]  %s217, 512, %s219, %s208, 64, 64, 4
        $region28: #{tpu_custom_call.1} parent=15 // pred_fallthru
          _
        // Predicated region
        $region29: #{tpu_custom_call.1} parent=15 // pred_check
          %p225 = pneg %p117
        $region30: #{tpu_custom_call.1} parent=15 // pred_check_branch
          %227 = sbr.rel (%p225) target = $region32
        $region31: #{tpu_custom_call.1} parent=15 // pred_region
          %s228 = sand.u32 %s107, 1
          %s229 = scalar_lea.sflag [#allocation8], %s228
          %s230 = sand.u32 %s107, 1
          %s231 = smul.addr %s230, 320
          %s232 = scalar_lea.vmem [#allocation7], %s231
          %s233 = smul.u32 8, %s19
          %s235 = ssub.s32 5120, 5120
          %236 = vsyncadd %s229, %s235
          %s237 = smul.addr %s233, 10
          %s238 = smul.addr %s237, 64
          %s239 = scalar_lea.hbm %s3, %s238
          %s240 = sshll.u32 %s232, 4
          %s241 = int_to_ptr.vmem [resolvable:$true] %s240
          %246 = dma.hbm_to_vmem [thread:$0]  %s239, 5120, %s241, %s229, 64, 64, 4
        $region32: #{tpu_custom_call.1} parent=15 // pred_fallthru
          _
      $region16: #{tpu_custom_call.1} parent=5 // pred_fallthru
        _
      %p247 = scmp.le.s32.totalorder 1, %s19
      %p248 = scmp.lt.s32.totalorder %s19, 3
      %p249 = pnand %p247, %p248
      %p250 = pneg %p249
      // Predicated region
      $region33: #{tpu_custom_call.1} parent=5 // pred_check
        _
      $region34: #{tpu_custom_call.1} parent=5 // pred_check_branch
        %252 = sbr.rel (%p249) target = $region36
      $region35: #{tpu_custom_call.1} parent=5 // pred_region
        %s253 = ssub.s32 %s19, 1
        %s254 = sand.u32 %s32, 1
        %s255 = scalar_lea.sflag [#allocation3], %s254
        %s256 = sand.u32 %s32, 1
        %s257 = smul.addr %s256, 8
        %s258 = scalar_lea.vmem [#allocation2], %s257
        // Predicated region
        $region37: #{tpu_custom_call.1} parent=35 // pred_check
          %p259 = pneg %p45
        $region38: #{tpu_custom_call.1} parent=35 // pred_check_branch
          %261 = sbr.rel (%p259) target = $region40
        $region39: #{tpu_custom_call.1} parent=35 // pred_region
          %262 = dma.done %s255, 128
        $region40: #{tpu_custom_call.1} parent=35 // pred_fallthru
          _
        %s263 = sand.u32 %s24, 1
        %s264 = scalar_lea.sflag [#allocation5], %s263
        %s265 = sand.u32 %s58, 1
        %s266 = smul.addr %s265, 8
        %s267 = scalar_lea.vmem [#allocation4], %s266
        // Predicated region
        $region41: #{tpu_custom_call.1} parent=35 // pred_check
          %p268 = pneg %p71
        $region42: #{tpu_custom_call.1} parent=35 // pred_check_branch
          %270 = sbr.rel (%p268) target = $region44
        $region43: #{tpu_custom_call.1} parent=35 // pred_region
          %271 = dma.done %s264, 128
        $region44: #{tpu_custom_call.1} parent=35 // pred_fallthru
          _
        %s272 = sand.u32 %s24, 1
        %s273 = scalar_lea.sflag [#allocation5], %s272
        %s274 = sand.u32 %s84, 1
        %s275 = smul.addr %s274, 32
        %s276 = scalar_lea.vmem [#allocation6], %s275
        // Predicated region
        $region45: #{tpu_custom_call.1} parent=35 // pred_check
          %p277 = pneg %p97
        $region46: #{tpu_custom_call.1} parent=35 // pred_check_branch
          %279 = sbr.rel (%p277) target = $region48
        $region47: #{tpu_custom_call.1} parent=35 // pred_region
          %280 = dma.done %s273, 512
        $region48: #{tpu_custom_call.1} parent=35 // pred_fallthru
          _
        %s281 = sand.u32 %s110, 1
        %s282 = scalar_lea.sflag [#allocation8], %s281
        %s283 = sand.u32 %s110, 1
        %s284 = smul.addr %s283, 320
        %s285 = scalar_lea.vmem [#allocation7], %s284
        // Predicated region
        $region49: #{tpu_custom_call.1} parent=35 // pred_check
          %p286 = pneg %p123
        $region50: #{tpu_custom_call.1} parent=35 // pred_check_branch
          %288 = sbr.rel (%p286) target = $region52
        $region51: #{tpu_custom_call.1} parent=35 // pred_region
          %289 = dma.done %s282, 5120
        $region52: #{tpu_custom_call.1} parent=35 // pred_fallthru
          _
        %s290 = sand.u32 %s32, 1
        %s291 = scalar_lea.sflag [#allocation3], %s290
        %s292 = sand.u32 %s32, 1
        %s293 = smul.addr %s292, 8
        %s294 = scalar_lea.vmem [#allocation2], %s293
        %p295 = pneg %p45
        %p296 = pneg %p42
        %s297 = sand.u32 %s24, 1
        %s298 = scalar_lea.sflag [#allocation5], %s297
        %s299 = sand.u32 %s58, 1
        %s300 = smul.addr %s299, 8
        %s301 = scalar_lea.vmem [#allocation4], %s300
        %p302 = pneg %p71
        %p303 = pneg %p68
        %s304 = sand.u32 %s24, 1
        %s305 = scalar_lea.sflag [#allocation5], %s304
        %s306 = sand.u32 %s84, 1
        %s307 = smul.addr %s306, 32
        %s308 = scalar_lea.vmem [#allocation6], %s307
        %p309 = pneg %p97
        %p310 = pneg %p94
        %s311 = sand.u32 %s110, 1
        %s312 = scalar_lea.sflag [#allocation8], %s311
        %s313 = sand.u32 %s110, 1
        %s314 = smul.addr %s313, 320
        %s315 = scalar_lea.vmem [#allocation7], %s314
        %p316 = pneg %p123
        %p317 = pneg %p120
        %p318 = pneg %p149
        %p319 = pneg %p146
        %p320 = scmp.lt.s32.totalorder %s24, 1
        %s321 = scalar_select %p320, %s24, 1
        %s322 = smul.addr %s321, 8
        %s323 = scalar_lea.vmem %s4, %s322
        %s324 = smul.u32 8, %s24
        %s325 = smul.u32 8, %s24
        %p326 = scmp.lt.s32.totalorder %s24, 1
        %s327 = scalar_select %p326, %s24, 1
        %s328 = smul.addr %s327, 8
        %s329 = scalar_lea.vmem %s4, %s328
        %v331 = vld [vmem:[%s258] sm:$0xff]
        %v332 = vld [vmem:[%s267] sm:$0xff]
        %v333 = vadd.f32 %v331, %v332
        %v334 = vpack.c.bf16 %v333, %v333
        %v337 = vunpack.c.l.s4 1966171168
        %v338 = vunpack.c.0.s8 %v337
        %v339 = vlaneseq
        %v340 = vshrl.u32 %v339, 7
        %v341 = vsub.s32 %v338, %v340
        %v342 = vrot.slane %v334, %v341
        %v343 = vcombine.high %v342, %v342
        %v345 = vunpack.c.l.s4 1966171168
        %v346 = vunpack.c.0.s8 %v345
        %v347 = vlaneseq
        %v348 = vshrl.u32 %v347, 7
        %v349 = vsub.s32 %v346, %v348
        %v350 = vrot.slane %v342, %v349
        %v352 = vunpack.c.l.s4 1966171168
        %v353 = vunpack.c.0.s8 %v352
        %v354 = vlaneseq
        %v355 = vshrl.u32 %v354, 7
        %v356 = vsub.s32 %v353, %v355
        %v357 = vrot.slane %v343, %v356
        %v358 = vcombine.high %v350, %v350
        %v359 = vcombine.high %v357, %v357
        %v360 = vunpack.i.l.s16 %v350
        %v361 = vunpack.i.h.s16 %v350
        %v362 = vunpack.i.l.s16 %v357
        %v363 = vunpack.i.h.s16 %v357
        %v364 = vunpack.i.l.s16 %v358
        %v365 = vunpack.i.h.s16 %v358
        %v366 = vunpack.i.l.s16 %v359
        %v367 = vunpack.i.h.s16 %v359
        %v368 = vld [vmem:[%s276] sm:$0xf]
        %v369 = vld [vmem:[%s276 + $0x4] sm:$0xf]
        %v370 = vld [vmem:[%s276 + $0x8] sm:$0xf]
        %v371 = vld [vmem:[%s276 + $0xc] sm:$0xf]
        %v372 = vld [vmem:[%s276 + $0x10] sm:$0xf]
        %v373 = vld [vmem:[%s276 + $0x14] sm:$0xf]
        %v374 = vld [vmem:[%s276 + $0x18] sm:$0xf]
        %v375 = vld [vmem:[%s276 + $0x1c] sm:$0xf]
        %v376 = vpack.i.b16 %v360, %v360
        %v377 = vlaneseq
        %v378 = vshrl.u32 %v377, 7
        %v379 = vsub.s32 0, %v378
        %v380 = vrot.slane %v376, %v379
        %382 = vmatprep.subr.bf16.mxu0 0
        %383 = vmatpush1.bf16.xpose.msra.mxu0 %v368
        %384 = vmatprep.subr.bf16.mxu0 0
        %385 = vmatpush1.bf16.xpose.msra.mxu0 0
        %386 = vmatprep.subr.bf16.mxu0 0
        %387 = vmatpush1.bf16.xpose.msra.mxu0 0
        %388 = vmatprep.subr.bf16.mxu0 0
        %389 = vmatpush1.bf16.xpose.msra.mxu0 0
        %390 = vmatprep.subr.bf16.mxu0 0
        %391 = vmatpush1.bf16.xpose.msra.mxu0 0
        %392 = vmatprep.subr.bf16.mxu0 0
        %393 = vmatpush1.bf16.xpose.msra.mxu0 0
        %394 = vmatprep.subr.bf16.mxu0 0
        %395 = vmatpush1.bf16.xpose.msra.mxu0 0
        %396 = vmatprep.subr.bf16.mxu0 0
        %397 = vmatpush1.bf16.xpose.msra.mxu0 0
        %398 = vmatprep.subr.bf16.mxu0 0
        %399 = vmatpush1.bf16.xpose.msra.mxu0 0
        %400 = vmatprep.subr.bf16.mxu0 0
        %401 = vmatpush1.bf16.xpose.msra.mxu0 0
        %402 = vmatprep.subr.bf16.mxu0 0
        %403 = vmatpush1.bf16.xpose.msra.mxu0 0
        %404 = vmatprep.subr.bf16.mxu0 0
        %405 = vmatpush1.bf16.xpose.msra.mxu0 0
        %406 = vmatprep.subr.bf16.mxu0 0
        %407 = vmatpush1.bf16.xpose.msra.mxu0 0
        %408 = vmatprep.subr.bf16.mxu0 0
        %409 = vmatpush1.bf16.xpose.msra.mxu0 0
        %410 = vmatprep.subr.bf16.mxu0 0
        %411 = vmatpush1.bf16.xpose.msra.mxu0 0
        %412 = vmatprep.subr.bf16.mxu0 0
        %413 = vmatpush1.bf16.xpose.msra.mxu0 0
        %414 = vmatprep.mubr.bf16.mxu0 0
        %415 = vmatmul.mubr.bf16.gmra.mrb[0].mxu0 %v380
        %v416 = vpop.f32.mrb[0].mxu0
        %v417 = vadd.f32 0.0, %v416
        %v418 = vpop.f32.mrb[0].mxu0
        %v419 = vpop.f32.mrb[0].mxu0
        %v420 = vpop.f32.mrb[0].mxu0
        %421 = vdwg.mxu0
        %v422 = vpack.i.b16 %v361, %v361
        %v423 = vlaneseq
        %v424 = vshrl.u32 %v423, 7
        %v425 = vsub.s32 0, %v424
        %v426 = vrot.slane %v422, %v425
        %428 = vmatprep.subr.bf16.mxu0 0
        %429 = vmatpush1.bf16.xpose.msra.mxu0 %v369
        %430 = vmatprep.subr.bf16.mxu0 0
        %431 = vmatpush1.bf16.xpose.msra.mxu0 0
        %432 = vmatprep.subr.bf16.mxu0 0
        %433 = vmatpush1.bf16.xpose.msra.mxu0 0
        %434 = vmatprep.subr.bf16.mxu0 0
        %435 = vmatpush1.bf16.xpose.msra.mxu0 0
        %436 = vmatprep.subr.bf16.mxu0 0
        %437 = vmatpush1.bf16.xpose.msra.mxu0 0
        %438 = vmatprep.subr.bf16.mxu0 0
        %439 = vmatpush1.bf16.xpose.msra.mxu0 0
        %440 = vmatprep.subr.bf16.mxu0 0
        %441 = vmatpush1.bf16.xpose.msra.mxu0 0
        %442 = vmatprep.subr.bf16.mxu0 0
        %443 = vmatpush1.bf16.xpose.msra.mxu0 0
        %444 = vmatprep.subr.bf16.mxu0 0
        %445 = vmatpush1.bf16.xpose.msra.mxu0 0
        %446 = vmatprep.subr.bf16.mxu0 0
        %447 = vmatpush1.bf16.xpose.msra.mxu0 0
        %448 = vmatprep.subr.bf16.mxu0 0
        %449 = vmatpush1.bf16.xpose.msra.mxu0 0
        %450 = vmatprep.subr.bf16.mxu0 0
        %451 = vmatpush1.bf16.xpose.msra.mxu0 0
        %452 = vmatprep.subr.bf16.mxu0 0
        %453 = vmatpush1.bf16.xpose.msra.mxu0 0
        %454 = vmatprep.subr.bf16.mxu0 0
        %455 = vmatpush1.bf16.xpose.msra.mxu0 0
        %456 = vmatprep.subr.bf16.mxu0 0
        %457 = vmatpush1.bf16.xpose.msra.mxu0 0
        %458 = vmatprep.subr.bf16.mxu0 0
        %459 = vmatpush1.bf16.xpose.msra.mxu0 0
        %460 = vmatprep.mubr.bf16.mxu0 0
        %461 = vmatmul.mubr.bf16.gmra.mrb[0].mxu0 %v426
        %v462 = vpop.f32.mrb[0].mxu0
        %v463 = vadd.f32 0.0, %v462
        %v464 = vpop.f32.mrb[0].mxu0
        %v465 = vpop.f32.mrb[0].mxu0
        %v466 = vpop.f32.mrb[0].mxu0
        %467 = vdwg.mxu0
        %v468 = vpack.i.b16 %v362, %v362
        %v469 = vlaneseq
        %v470 = vshrl.u32 %v469, 7
        %v471 = vsub.s32 0, %v470
        %v472 = vrot.slane %v468, %v471
        %474 = vmatprep.subr.bf16.mxu0 0
        %475 = vmatpush1.bf16.xpose.msra.mxu0 %v370
        %476 = vmatprep.subr.bf16.mxu0 0
        %477 = vmatpush1.bf16.xpose.msra.mxu0 0
        %478 = vmatprep.subr.bf16.mxu0 0
        %479 = vmatpush1.bf16.xpose.msra.mxu0 0
        %480 = vmatprep.subr.bf16.mxu0 0
        %481 = vmatpush1.bf16.xpose.msra.mxu0 0
        %482 = vmatprep.subr.bf16.mxu0 0
        %483 = vmatpush1.bf16.xpose.msra.mxu0 0
        %484 = vmatprep.subr.bf16.mxu0 0
        %485 = vmatpush1.bf16.xpose.msra.mxu0 0
        %486 = vmatprep.subr.bf16.mxu0 0
        %487 = vmatpush1.bf16.xpose.msra.mxu0 0
        %488 = vmatprep.subr.bf16.mxu0 0
        %489 = vmatpush1.bf16.xpose.msra.mxu0 0
        %490 = vmatprep.subr.bf16.mxu0 0
        %491 = vmatpush1.bf16.xpose.msra.mxu0 0
        %492 = vmatprep.subr.bf16.mxu0 0
        %493 = vmatpush1.bf16.xpose.msra.mxu0 0
        %494 = vmatprep.subr.bf16.mxu0 0
        %495 = vmatpush1.bf16.xpose.msra.mxu0 0
        %496 = vmatprep.subr.bf16.mxu0 0
        %497 = vmatpush1.bf16.xpose.msra.mxu0 0
        %498 = vmatprep.subr.bf16.mxu0 0
        %499 = vmatpush1.bf16.xpose.msra.mxu0 0
        %500 = vmatprep.subr.bf16.mxu0 0
        %501 = vmatpush1.bf16.xpose.msra.mxu0 0
        %502 = vmatprep.subr.bf16.mxu0 0
        %503 = vmatpush1.bf16.xpose.msra.mxu0 0
        %504 = vmatprep.subr.bf16.mxu0 0
        %505 = vmatpush1.bf16.xpose.msra.mxu0 0
        %506 = vmatprep.mubr.bf16.mxu0 0
        %507 = vmatmul.mubr.bf16.gmra.mrb[0].mxu0 %v472
        %v508 = vpop.f32.mrb[0].mxu0
        %v509 = vadd.f32 0.0, %v508
        %v510 = vpop.f32.mrb[0].mxu0
        %v511 = vpop.f32.mrb[0].mxu0
        %v512 = vpop.f32.mrb[0].mxu0
        %513 = vdwg.mxu0
        %v514 = vpack.i.b16 %v363, %v363
        %v515 = vlaneseq
        %v516 = vshrl.u32 %v515, 7
        %v517 = vsub.s32 0, %v516
        %v518 = vrot.slane %v514, %v517
        %520 = vmatprep.subr.bf16.mxu0 0
        %521 = vmatpush1.bf16.xpose.msra.mxu0 %v371
        %522 = vmatprep.subr.bf16.mxu0 0
        %523 = vmatpush1.bf16.xpose.msra.mxu0 0
        %524 = vmatprep.subr.bf16.mxu0 0
        %525 = vmatpush1.bf16.xpose.msra.mxu0 0
        %526 = vmatprep.subr.bf16.mxu0 0
        %527 = vmatpush1.bf16.xpose.msra.mxu0 0
        %528 = vmatprep.subr.bf16.mxu0 0
        %529 = vmatpush1.bf16.xpose.msra.mxu0 0
        %530 = vmatprep.subr.bf16.mxu0 0
        %531 = vmatpush1.bf16.xpose.msra.mxu0 0
        %532 = vmatprep.subr.bf16.mxu0 0
        %533 = vmatpush1.bf16.xpose.msra.mxu0 0
        %534 = vmatprep.subr.bf16.mxu0 0
        %535 = vmatpush1.bf16.xpose.msra.mxu0 0
        %536 = vmatprep.subr.bf16.mxu0 0
        %537 = vmatpush1.bf16.xpose.msra.mxu0 0
        %538 = vmatprep.subr.bf16.mxu0 0
        %539 = vmatpush1.bf16.xpose.msra.mxu0 0
        %540 = vmatprep.subr.bf16.mxu0 0
        %541 = vmatpush1.bf16.xpose.msra.mxu0 0
        %542 = vmatprep.subr.bf16.mxu0 0
        %543 = vmatpush1.bf16.xpose.msra.mxu0 0
        %544 = vmatprep.subr.bf16.mxu0 0
        %545 = vmatpush1.bf16.xpose.msra.mxu0 0
        %546 = vmatprep.subr.bf16.mxu0 0
        %547 = vmatpush1.bf16.xpose.msra.mxu0 0
        %548 = vmatprep.subr.bf16.mxu0 0
        %549 = vmatpush1.bf16.xpose.msra.mxu0 0
        %550 = vmatprep.subr.bf16.mxu0 0
        %551 = vmatpush1.bf16.xpose.msra.mxu0 0
        %552 = vmatprep.mubr.bf16.mxu0 0
        %553 = vmatmul.mubr.bf16.gmra.mrb[0].mxu0 %v518
        %v554 = vpop.f32.mrb[0].mxu0
        %v555 = vadd.f32 0.0, %v554
        %v556 = vpop.f32.mrb[0].mxu0
        %v557 = vpop.f32.mrb[0].mxu0
        %v558 = vpop.f32.mrb[0].mxu0
        %559 = vdwg.mxu0
        %v560 = vpack.i.b16 %v364, %v364
        %v561 = vlaneseq
        %v562 = vshrl.u32 %v561, 7
        %v563 = vsub.s32 0, %v562
        %v564 = vrot.slane %v560, %v563
        %566 = vmatprep.subr.bf16.mxu0 0
        %567 = vmatpush1.bf16.xpose.msra.mxu0 %v372
        %568 = vmatprep.subr.bf16.mxu0 0
        %569 = vmatpush1.bf16.xpose.msra.mxu0 0
        %570 = vmatprep.subr.bf16.mxu0 0
        %571 = vmatpush1.bf16.xpose.msra.mxu0 0
        %572 = vmatprep.subr.bf16.mxu0 0
        %573 = vmatpush1.bf16.xpose.msra.mxu0 0
        %574 = vmatprep.subr.bf16.mxu0 0
        %575 = vmatpush1.bf16.xpose.msra.mxu0 0
        %576 = vmatprep.subr.bf16.mxu0 0
        %577 = vmatpush1.bf16.xpose.msra.mxu0 0
        %578 = vmatprep.subr.bf16.mxu0 0
        %579 = vmatpush1.bf16.xpose.msra.mxu0 0
        %580 = vmatprep.subr.bf16.mxu0 0
        %581 = vmatpush1.bf16.xpose.msra.mxu0 0
        %582 = vmatprep.subr.bf16.mxu0 0
        %583 = vmatpush1.bf16.xpose.msra.mxu0 0
        %584 = vmatprep.subr.bf16.mxu0 0
        %585 = vmatpush1.bf16.xpose.msra.mxu0 0
        %586 = vmatprep.subr.bf16.mxu0 0
        %587 = vmatpush1.bf16.xpose.msra.mxu0 0
        %588 = vmatprep.subr.bf16.mxu0 0
        %589 = vmatpush1.bf16.xpose.msra.mxu0 0
        %590 = vmatprep.subr.bf16.mxu0 0
        %591 = vmatpush1.bf16.xpose.msra.mxu0 0
        %592 = vmatprep.subr.bf16.mxu0 0
        %593 = vmatpush1.bf16.xpose.msra.mxu0 0
        %594 = vmatprep.subr.bf16.mxu0 0
        %595 = vmatpush1.bf16.xpose.msra.mxu0 0
        %596 = vmatprep.subr.bf16.mxu0 0
        %597 = vmatpush1.bf16.xpose.msra.mxu0 0
        %598 = vmatprep.mubr.bf16.mxu0 0
        %599 = vmatmul.mubr.bf16.gmra.mrb[0].mxu0 %v564
        %v600 = vpop.f32.mrb[0].mxu0
        %v601 = vadd.f32 0.0, %v600
        %v602 = vpop.f32.mrb[0].mxu0
        %v603 = vpop.f32.mrb[0].mxu0
        %v604 = vpop.f32.mrb[0].mxu0
        %605 = vdwg.mxu0
        %v606 = vpack.i.b16 %v365, %v365
        %v607 = vlaneseq
        %v608 = vshrl.u32 %v607, 7
        %v609 = vsub.s32 0, %v608
        %v610 = vrot.slane %v606, %v609
        %612 = vmatprep.subr.bf16.mxu0 0
        %613 = vmatpush1.bf16.xpose.msra.mxu0 %v373
        %614 = vmatprep.subr.bf16.mxu0 0
        %615 = vmatpush1.bf16.xpose.msra.mxu0 0
        %616 = vmatprep.subr.bf16.mxu0 0
        %617 = vmatpush1.bf16.xpose.msra.mxu0 0
        %618 = vmatprep.subr.bf16.mxu0 0
        %619 = vmatpush1.bf16.xpose.msra.mxu0 0
        %620 = vmatprep.subr.bf16.mxu0 0
        %621 = vmatpush1.bf16.xpose.msra.mxu0 0
        %622 = vmatprep.subr.bf16.mxu0 0
        %623 = vmatpush1.bf16.xpose.msra.mxu0 0
        %624 = vmatprep.subr.bf16.mxu0 0
        %625 = vmatpush1.bf16.xpose.msra.mxu0 0
        %626 = vmatprep.subr.bf16.mxu0 0
        %627 = vmatpush1.bf16.xpose.msra.mxu0 0
        %628 = vmatprep.subr.bf16.mxu0 0
        %629 = vmatpush1.bf16.xpose.msra.mxu0 0
        %630 = vmatprep.subr.bf16.mxu0 0
        %631 = vmatpush1.bf16.xpose.msra.mxu0 0
        %632 = vmatprep.subr.bf16.mxu0 0
        %633 = vmatpush1.bf16.xpose.msra.mxu0 0
        %634 = vmatprep.subr.bf16.mxu0 0
        %635 = vmatpush1.bf16.xpose.msra.mxu0 0
        %636 = vmatprep.subr.bf16.mxu0 0
        %637 = vmatpush1.bf16.xpose.msra.mxu0 0
        %638 = vmatprep.subr.bf16.mxu0 0
        %639 = vmatpush1.bf16.xpose.msra.mxu0 0
        %640 = vmatprep.subr.bf16.mxu0 0
        %641 = vmatpush1.bf16.xpose.msra.mxu0 0
        %642 = vmatprep.subr.bf16.mxu0 0
        %643 = vmatpush1.bf16.xpose.msra.mxu0 0
        %644 = vmatprep.mubr.bf16.mxu0 0
        %645 = vmatmul.mubr.bf16.gmra.mrb[0].mxu0 %v610
        %v646 = vpop.f32.mrb[0].mxu0
        %v647 = vadd.f32 0.0, %v646
        %v648 = vpop.f32.mrb[0].mxu0
        %v649 = vpop.f32.mrb[0].mxu0
        %v650 = vpop.f32.mrb[0].mxu0
        %651 = vdwg.mxu0
        %v652 = vpack.i.b16 %v366, %v366
        %v653 = vlaneseq
        %v654 = vshrl.u32 %v653, 7
        %v655 = vsub.s32 0, %v654
        %v656 = vrot.slane %v652, %v655
        %658 = vmatprep.subr.bf16.mxu0 0
        %659 = vmatpush1.bf16.xpose.msra.mxu0 %v374
        %660 = vmatprep.subr.bf16.mxu0 0
        %661 = vmatpush1.bf16.xpose.msra.mxu0 0
        %662 = vmatprep.subr.bf16.mxu0 0
        %663 = vmatpush1.bf16.xpose.msra.mxu0 0
        %664 = vmatprep.subr.bf16.mxu0 0
        %665 = vmatpush1.bf16.xpose.msra.mxu0 0
        %666 = vmatprep.subr.bf16.mxu0 0
        %667 = vmatpush1.bf16.xpose.msra.mxu0 0
        %668 = vmatprep.subr.bf16.mxu0 0
        %669 = vmatpush1.bf16.xpose.msra.mxu0 0
        %670 = vmatprep.subr.bf16.mxu0 0
        %671 = vmatpush1.bf16.xpose.msra.mxu0 0
        %672 = vmatprep.subr.bf16.mxu0 0
        %673 = vmatpush1.bf16.xpose.msra.mxu0 0
        %674 = vmatprep.subr.bf16.mxu0 0
        %675 = vmatpush1.bf16.xpose.msra.mxu0 0
        %676 = vmatprep.subr.bf16.mxu0 0
        %677 = vmatpush1.bf16.xpose.msra.mxu0 0
        %678 = vmatprep.subr.bf16.mxu0 0
        %679 = vmatpush1.bf16.xpose.msra.mxu0 0
        %680 = vmatprep.subr.bf16.mxu0 0
        %681 = vmatpush1.bf16.xpose.msra.mxu0 0
        %682 = vmatprep.subr.bf16.mxu0 0
        %683 = vmatpush1.bf16.xpose.msra.mxu0 0
        %684 = vmatprep.subr.bf16.mxu0 0
        %685 = vmatpush1.bf16.xpose.msra.mxu0 0
        %686 = vmatprep.subr.bf16.mxu0 0
        %687 = vmatpush1.bf16.xpose.msra.mxu0 0
        %688 = vmatprep.subr.bf16.mxu0 0
        %689 = vmatpush1.bf16.xpose.msra.mxu0 0
        %690 = vmatprep.mubr.bf16.mxu0 0
        %691 = vmatmul.mubr.bf16.gmra.mrb[0].mxu0 %v656
        %v692 = vpop.f32.mrb[0].mxu0
        %v693 = vadd.f32 0.0, %v692
        %v694 = vpop.f32.mrb[0].mxu0
        %v695 = vpop.f32.mrb[0].mxu0
        %v696 = vpop.f32.mrb[0].mxu0
        %697 = vdwg.mxu0
        %v698 = vpack.i.b16 %v367, %v367
        %v699 = vlaneseq
        %v700 = vshrl.u32 %v699, 7
        %v701 = vsub.s32 0, %v700
        %v702 = vrot.slane %v698, %v701
        %704 = vmatprep.subr.bf16.mxu0 0
        %705 = vmatpush1.bf16.xpose.msra.mxu0 %v375
        %706 = vmatprep.subr.bf16.mxu0 0
        %707 = vmatpush1.bf16.xpose.msra.mxu0 0
        %708 = vmatprep.subr.bf16.mxu0 0
        %709 = vmatpush1.bf16.xpose.msra.mxu0 0
        %710 = vmatprep.subr.bf16.mxu0 0
        %711 = vmatpush1.bf16.xpose.msra.mxu0 0
        %712 = vmatprep.subr.bf16.mxu0 0
        %713 = vmatpush1.bf16.xpose.msra.mxu0 0
        %714 = vmatprep.subr.bf16.mxu0 0
        %715 = vmatpush1.bf16.xpose.msra.mxu0 0
        %716 = vmatprep.subr.bf16.mxu0 0
        %717 = vmatpush1.bf16.xpose.msra.mxu0 0
        %718 = vmatprep.subr.bf16.mxu0 0
        %719 = vmatpush1.bf16.xpose.msra.mxu0 0
        %720 = vmatprep.subr.bf16.mxu0 0
        %721 = vmatpush1.bf16.xpose.msra.mxu0 0
        %722 = vmatprep.subr.bf16.mxu0 0
        %723 = vmatpush1.bf16.xpose.msra.mxu0 0
        %724 = vmatprep.subr.bf16.mxu0 0
        %725 = vmatpush1.bf16.xpose.msra.mxu0 0
        %726 = vmatprep.subr.bf16.mxu0 0
        %727 = vmatpush1.bf16.xpose.msra.mxu0 0
        %728 = vmatprep.subr.bf16.mxu0 0
        %729 = vmatpush1.bf16.xpose.msra.mxu0 0
        %730 = vmatprep.subr.bf16.mxu0 0
        %731 = vmatpush1.bf16.xpose.msra.mxu0 0
        %732 = vmatprep.subr.bf16.mxu0 0
        %733 = vmatpush1.bf16.xpose.msra.mxu0 0
        %734 = vmatprep.subr.bf16.mxu0 0
        %735 = vmatpush1.bf16.xpose.msra.mxu0 0
        %736 = vmatprep.mubr.bf16.mxu0 0
        %737 = vmatmul.mubr.bf16.gmra.mrb[0].mxu0 %v702
        %v738 = vpop.f32.mrb[0].mxu0
        %v739 = vadd.f32 0.0, %v738
        %v740 = vpop.f32.mrb[0].mxu0
        %v741 = vpop.f32.mrb[0].mxu0
        %v742 = vpop.f32.mrb[0].mxu0
        %743 = vdwg.mxu0
        %v744 = vld [vmem:[%s285] sm:$0xf]
        %v745 = vld [vmem:[%s285 + $0x4] sm:$0xf]
        %v746 = vld [vmem:[%s285 + $0x8] sm:$0xf]
        %v747 = vld [vmem:[%s285 + $0xc] sm:$0xf]
        %v748 = vld [vmem:[%s285 + $0x10] sm:$0xf]
        %v749 = vld [vmem:[%s285 + $0x14] sm:$0xf]
        %v750 = vld [vmem:[%s285 + $0x18] sm:$0xf]
        %v751 = vld [vmem:[%s285 + $0x1c] sm:$0xf]
        %v752 = vld [vmem:[%s285 + $0x20] sm:$0xf]
        %v753 = vld [vmem:[%s285 + $0x24] sm:$0xf]
        %v754 = vld [vmem:[%s285 + $0x28] sm:$0xf]
        %v755 = vld [vmem:[%s285 + $0x2c] sm:$0xf]
        %v756 = vld [vmem:[%s285 + $0x30] sm:$0xf]
        %v757 = vld [vmem:[%s285 + $0x34] sm:$0xf]
        %v758 = vld [vmem:[%s285 + $0x38] sm:$0xf]
        %v759 = vld [vmem:[%s285 + $0x3c] sm:$0xf]
        %v760 = vld [vmem:[%s285 + $0x40] sm:$0xf]
        %v761 = vld [vmem:[%s285 + $0x44] sm:$0xf]
        %v762 = vld [vmem:[%s285 + $0x48] sm:$0xf]
        %v763 = vld [vmem:[%s285 + $0x4c] sm:$0xf]
        %v764 = vld [vmem:[%s285 + $0x50] sm:$0xf]
        %v765 = vld [vmem:[%s285 + $0x54] sm:$0xf]
        %v766 = vld [vmem:[%s285 + $0x58] sm:$0xf]
        %v767 = vld [vmem:[%s285 + $0x5c] sm:$0xf]
        %v768 = vld [vmem:[%s285 + $0x60] sm:$0xf]
        %v769 = vld [vmem:[%s285 + $0x64] sm:$0xf]
        %v770 = vld [vmem:[%s285 + $0x68] sm:$0xf]
        %v771 = vld [vmem:[%s285 + $0x6c] sm:$0xf]
        %v772 = vld [vmem:[%s285 + $0x70] sm:$0xf]
        %v773 = vld [vmem:[%s285 + $0x74] sm:$0xf]
        %v774 = vld [vmem:[%s285 + $0x78] sm:$0xf]
        %v775 = vld [vmem:[%s285 + $0x7c] sm:$0xf]
        %v776 = vld [vmem:[%s285 + $0x80] sm:$0xf]
        %v777 = vld [vmem:[%s285 + $0x84] sm:$0xf]
        %v778 = vld [vmem:[%s285 + $0x88] sm:$0xf]
        %v779 = vld [vmem:[%s285 + $0x8c] sm:$0xf]
        %v780 = vld [vmem:[%s285 + $0x90] sm:$0xf]
        %v781 = vld [vmem:[%s285 + $0x94] sm:$0xf]
        %v782 = vld [vmem:[%s285 + $0x98] sm:$0xf]
        %v783 = vld [vmem:[%s285 + $0x9c] sm:$0xf]
        %v784 = vld [vmem:[%s285 + $0xa0] sm:$0xf]
        %v785 = vld [vmem:[%s285 + $0xa4] sm:$0xf]
        %v786 = vld [vmem:[%s285 + $0xa8] sm:$0xf]
        %v787 = vld [vmem:[%s285 + $0xac] sm:$0xf]
        %v788 = vld [vmem:[%s285 + $0xb0] sm:$0xf]
        %v789 = vld [vmem:[%s285 + $0xb4] sm:$0xf]
        %v790 = vld [vmem:[%s285 + $0xb8] sm:$0xf]
        %v791 = vld [vmem:[%s285 + $0xbc] sm:$0xf]
        %v792 = vld [vmem:[%s285 + $0xc0] sm:$0xf]
        %v793 = vld [vmem:[%s285 + $0xc4] sm:$0xf]
        %v794 = vld [vmem:[%s285 + $0xc8] sm:$0xf]
        %v795 = vld [vmem:[%s285 + $0xcc] sm:$0xf]
        %v796 = vld [vmem:[%s285 + $0xd0] sm:$0xf]
        %v797 = vld [vmem:[%s285 + $0xd4] sm:$0xf]
        %v798 = vld [vmem:[%s285 + $0xd8] sm:$0xf]
        %v799 = vld [vmem:[%s285 + $0xdc] sm:$0xf]
        %v800 = vld [vmem:[%s285 + $0xe0] sm:$0xf]
        %v801 = vld [vmem:[%s285 + $0xe4] sm:$0xf]
        %v802 = vld [vmem:[%s285 + $0xe8] sm:$0xf]
        %v803 = vld [vmem:[%s285 + $0xec] sm:$0xf]
        %v804 = vld [vmem:[%s285 + $0xf0] sm:$0xf]
        %v805 = vld [vmem:[%s285 + $0xf4] sm:$0xf]
        %v806 = vld [vmem:[%s285 + $0xf8] sm:$0xf]
        %v807 = vld [vmem:[%s285 + $0xfc] sm:$0xf]
        %v808 = vld [vmem:[%s285 + $0x100] sm:$0xf]
        %v809 = vld [vmem:[%s285 + $0x104] sm:$0xf]
        %v810 = vld [vmem:[%s285 + $0x108] sm:$0xf]
        %v811 = vld [vmem:[%s285 + $0x10c] sm:$0xf]
        %v812 = vld [vmem:[%s285 + $0x110] sm:$0xf]
        %v813 = vld [vmem:[%s285 + $0x114] sm:$0xf]
        %v814 = vld [vmem:[%s285 + $0x118] sm:$0xf]
        %v815 = vld [vmem:[%s285 + $0x11c] sm:$0xf]
        %v816 = vld [vmem:[%s285 + $0x120] sm:$0xf]
        %v817 = vld [vmem:[%s285 + $0x124] sm:$0xf]
        %v818 = vld [vmem:[%s285 + $0x128] sm:$0xf]
        %v819 = vld [vmem:[%s285 + $0x12c] sm:$0xf]
        %v820 = vld [vmem:[%s285 + $0x130] sm:$0xf]
        %v821 = vld [vmem:[%s285 + $0x134] sm:$0xf]
        %v822 = vld [vmem:[%s285 + $0x138] sm:$0xf]
        %v823 = vld [vmem:[%s285 + $0x13c] sm:$0xf]
        %v834 = vunpack.c.l.b16 %v744
        %v835 = vunpack.c.l.b16 %v745
        %v836 = vunpack.c.l.b16 %v746
        %v837 = vunpack.c.l.b16 %v747
        %v838 = vunpack.c.l.b16 %v748
        %v839 = vunpack.c.l.b16 %v749
        %v840 = vunpack.c.l.b16 %v750
        %v841 = vunpack.c.l.b16 %v751
        %v842 = vunpack.c.l.b16 %v752
        %v843 = vunpack.c.l.b16 %v753
        %v844 = vpack.c.b16 %v835, %v834
        %v845 = vpack.c.b16 %v837, %v836
        %v846 = vpack.c.b16 %v839, %v838
        %v847 = vpack.c.b16 %v841, %v840
        %v848 = vpack.c.b16 %v843, %v842
        %854 = vmatprep.subr.bf16.mxu0 0
        %855 = vmatpush1.bf16.xpose.msra.mxu0 %v844
        %856 = vmatprep.subr.bf16.mxu0 0
        %857 = vmatpush1.bf16.xpose.msra.mxu0 %v845
        %858 = vmatprep.subr.bf16.mxu0 0
        %859 = vmatpush1.bf16.xpose.msra.mxu0 %v846
        %860 = vmatprep.subr.bf16.mxu0 0
        %861 = vmatpush1.bf16.xpose.msra.mxu0 %v847
        %862 = vmatprep.subr.bf16.mxu0 0
        %863 = vmatpush1.bf16.xpose.msra.mxu0 %v848
        %864 = vmatprep.subr.bf16.mxu0 0
        %865 = vmatpush1.bf16.xpose.msra.mxu0 0
        %866 = vmatprep.subr.bf16.mxu0 0
        %867 = vmatpush1.bf16.xpose.msra.mxu0 0
        %868 = vmatprep.subr.bf16.mxu0 0
        %869 = vmatpush1.bf16.xpose.msra.mxu0 0
        %870 = vmatprep.subr.bf16.mxu0 0
        %871 = vmatpush1.bf16.xpose.msra.mxu0 0
        %872 = vmatprep.subr.bf16.mxu0 0
        %873 = vmatpush1.bf16.xpose.msra.mxu0 0
        %874 = vmatprep.subr.bf16.mxu0 0
        %875 = vmatpush1.bf16.xpose.msra.mxu0 0
        %876 = vmatprep.subr.bf16.mxu0 0
        %877 = vmatpush1.bf16.xpose.msra.mxu0 0
        %878 = vmatprep.subr.bf16.mxu0 0
        %879 = vmatpush1.bf16.xpose.msra.mxu0 0
        %880 = vmatprep.subr.bf16.mxu0 0
        %881 = vmatpush1.bf16.xpose.msra.mxu0 0
        %882 = vmatprep.subr.bf16.mxu0 0
        %883 = vmatpush1.bf16.xpose.msra.mxu0 0
        %884 = vmatprep.subr.bf16.mxu0 0
        %885 = vmatpush1.bf16.xpose.msra.mxu0 0
        %886 = vmatprep.mubr.bf16.mxu0 0
        %887 = vmatmul.mubr.bf16.gmra.mrb[0].mxu0 %v380
        %v888 = vpop.f32.mrb[0].mxu0
        %v889 = vadd.f32 0.0, %v888
        %v890 = vpop.f32.mrb[0].mxu0
        %v891 = vpop.f32.mrb[0].mxu0
        %v892 = vpop.f32.mrb[0].mxu0
        %893 = vdwg.mxu0
        %v904 = vunpack.c.l.b16 %v754
        %v905 = vunpack.c.l.b16 %v755
        %v906 = vunpack.c.l.b16 %v756
        %v907 = vunpack.c.l.b16 %v757
        %v908 = vunpack.c.l.b16 %v758
        %v909 = vunpack.c.l.b16 %v759
        %v910 = vunpack.c.l.b16 %v760
        %v911 = vunpack.c.l.b16 %v761
        %v912 = vunpack.c.l.b16 %v762
        %v913 = vunpack.c.l.b16 %v763
        %v914 = vpack.c.b16 %v905, %v904
        %v915 = vpack.c.b16 %v907, %v906
        %v916 = vpack.c.b16 %v909, %v908
        %v917 = vpack.c.b16 %v911, %v910
        %v918 = vpack.c.b16 %v913, %v912
        %924 = vmatprep.subr.bf16.mxu0 0
        %925 = vmatpush1.bf16.xpose.msra.mxu0 %v914
        %926 = vmatprep.subr.bf16.mxu0 0
        %927 = vmatpush1.bf16.xpose.msra.mxu0 %v915
        %928 = vmatprep.subr.bf16.mxu0 0
        %929 = vmatpush1.bf16.xpose.msra.mxu0 %v916
        %930 = vmatprep.subr.bf16.mxu0 0
        %931 = vmatpush1.bf16.xpose.msra.mxu0 %v917
        %932 = vmatprep.subr.bf16.mxu0 0
        %933 = vmatpush1.bf16.xpose.msra.mxu0 %v918
        %934 = vmatprep.subr.bf16.mxu0 0
        %935 = vmatpush1.bf16.xpose.msra.mxu0 0
        %936 = vmatprep.subr.bf16.mxu0 0
        %937 = vmatpush1.bf16.xpose.msra.mxu0 0
        %938 = vmatprep.subr.bf16.mxu0 0
        %939 = vmatpush1.bf16.xpose.msra.mxu0 0
        %940 = vmatprep.subr.bf16.mxu0 0
        %941 = vmatpush1.bf16.xpose.msra.mxu0 0
        %942 = vmatprep.subr.bf16.mxu0 0
        %943 = vmatpush1.bf16.xpose.msra.mxu0 0
        %944 = vmatprep.subr.bf16.mxu0 0
        %945 = vmatpush1.bf16.xpose.msra.mxu0 0
        %946 = vmatprep.subr.bf16.mxu0 0
        %947 = vmatpush1.bf16.xpose.msra.mxu0 0
        %948 = vmatprep.subr.bf16.mxu0 0
        %949 = vmatpush1.bf16.xpose.msra.mxu0 0
        %950 = vmatprep.subr.bf16.mxu0 0
        %951 = vmatpush1.bf16.xpose.msra.mxu0 0
        %952 = vmatprep.subr.bf16.mxu0 0
        %953 = vmatpush1.bf16.xpose.msra.mxu0 0
        %954 = vmatprep.subr.bf16.mxu0 0
        %955 = vmatpush1.bf16.xpose.msra.mxu0 0
        %956 = vmatprep.mubr.bf16.mxu0 0
        %957 = vmatmul.mubr.bf16.gmra.mrb[0].mxu0 %v426
        %v958 = vpop.f32.mrb[0].mxu0
        %v959 = vadd.f32 0.0, %v958
        %v960 = vpop.f32.mrb[0].mxu0
        %v961 = vpop.f32.mrb[0].mxu0
        %v962 = vpop.f32.mrb[0].mxu0
        %963 = vdwg.mxu0
        %v974 = vunpack.c.l.b16 %v764
        %v975 = vunpack.c.l.b16 %v765
        %v976 = vunpack.c.l.b16 %v766
        %v977 = vunpack.c.l.b16 %v767
        %v978 = vunpack.c.l.b16 %v768
        %v979 = vunpack.c.l.b16 %v769
        %v980 = vunpack.c.l.b16 %v770
        %v981 = vunpack.c.l.b16 %v771
        %v982 = vunpack.c.l.b16 %v772
        %v983 = vunpack.c.l.b16 %v773
        %v984 = vpack.c.b16 %v975, %v974
        %v985 = vpack.c.b16 %v977, %v976
        %v986 = vpack.c.b16 %v979, %v978
        %v987 = vpack.c.b16 %v981, %v980
        %v988 = vpack.c.b16 %v983, %v982
        %994 = vmatprep.subr.bf16.mxu0 0
        %995 = vmatpush1.bf16.xpose.msra.mxu0 %v984
        %996 = vmatprep.subr.bf16.mxu0 0
        %997 = vmatpush1.bf16.xpose.msra.mxu0 %v985
        %998 = vmatprep.subr.bf16.mxu0 0
        %999 = vmatpush1.bf16.xpose.msra.mxu0 %v986
        %1000 = vmatprep.subr.bf16.mxu0 0
        %1001 = vmatpush1.bf16.xpose.msra.mxu0 %v987
        %1002 = vmatprep.subr.bf16.mxu0 0
        %1003 = vmatpush1.bf16.xpose.msra.mxu0 %v988
        %1004 = vmatprep.subr.bf16.mxu0 0
        %1005 = vmatpush1.bf16.xpose.msra.mxu0 0
        %1006 = vmatprep.subr.bf16.mxu0 0
        %1007 = vmatpush1.bf16.xpose.msra.mxu0 0
        %1008 = vmatprep.subr.bf16.mxu0 0
        %1009 = vmatpush1.bf16.xpose.msra.mxu0 0
        %1010 = vmatprep.subr.bf16.mxu0 0
        %1011 = vmatpush1.bf16.xpose.msra.mxu0 0
        %1012 = vmatprep.subr.bf16.mxu0 0
        %1013 = vmatpush1.bf16.xpose.msra.mxu0 0
        %1014 = vmatprep.subr.bf16.mxu0 0
        %1015 = vmatpush1.bf16.xpose.msra.mxu0 0
        %1016 = vmatprep.subr.bf16.mxu0 0
        %1017 = vmatpush1.bf16.xpose.msra.mxu0 0
        %1018 = vmatprep.subr.bf16.mxu0 0
        %1019 = vmatpush1.bf16.xpose.msra.mxu0 0
        %1020 = vmatprep.subr.bf16.mxu0 0
        %1021 = vmatpush1.bf16.xpose.msra.mxu0 0
        %1022 = vmatprep.subr.bf16.mxu0 0
        %1023 = vmatpush1.bf16.xpose.msra.mxu0 0
        %1024 = vmatprep.subr.bf16.mxu0 0
        %1025 = vmatpush1.bf16.xpose.msra.mxu0 0
        %1026 = vmatprep.mubr.bf16.mxu0 0
        %1027 = vmatmul.mubr.bf16.gmra.mrb[0].mxu0 %v472
        %v1028 = vpop.f32.mrb[0].mxu0
        %v1029 = vadd.f32 0.0, %v1028
        %v1030 = vpop.f32.mrb[0].mxu0
        %v1031 = vpop.f32.mrb[0].mxu0
        %v1032 = vpop.f32.mrb[0].mxu0
        %1033 = vdwg.mxu0
        %v1044 = vunpack.c.l.b16 %v774
        %v1045 = vunpack.c.l.b16 %v775
        %v1046 = vunpack.c.l.b16 %v776
        %v1047 = vunpack.c.l.b16 %v777
        %v1048 = vunpack.c.l.b16 %v778
        %v1049 = vunpack.c.l.b16 %v779
        %v1050 = vunpack.c.l.b16 %v780
        %v1051 = vunpack.c.l.b16 %v781
        %v1052 = vunpack.c.l.b16 %v782
        %v1053 = vunpack.c.l.b16 %v783
        %v1054 = vpack.c.b16 %v1045, %v1044
        %v1055 = vpack.c.b16 %v1047, %v1046
        %v1056 = vpack.c.b16 %v1049, %v1048
        %v1057 = vpack.c.b16 %v1051, %v1050
        %v1058 = vpack.c.b16 %v1053, %v1052
        %1064 = vmatprep.subr.bf16.mxu0 0
        %1065 = vmatpush1.bf16.xpose.msra.mxu0 %v1054
        %1066 = vmatprep.subr.bf16.mxu0 0
        %1067 = vmatpush1.bf16.xpose.msra.mxu0 %v1055
        %1068 = vmatprep.subr.bf16.mxu0 0
        %1069 = vmatpush1.bf16.xpose.msra.mxu0 %v1056
        %1070 = vmatprep.subr.bf16.mxu0 0
        %1071 = vmatpush1.bf16.xpose.msra.mxu0 %v1057
        %1072 = vmatprep.subr.bf16.mxu0 0
        %1073 = vmatpush1.bf16.xpose.msra.mxu0 %v1058
        %1074 = vmatprep.subr.bf16.mxu0 0
        %1075 = vmatpush1.bf16.xpose.msra.mxu0 0
        %1076 = vmatprep.subr.bf16.mxu0 0
        %1077 = vmatpush1.bf16.xpose.msra.mxu0 0
        %1078 = vmatprep.subr.bf16.mxu0 0
        %1079 = vmatpush1.bf16.xpose.msra.mxu0 0
        %1080 = vmatprep.subr.bf16.mxu0 0
        %1081 = vmatpush1.bf16.xpose.msra.mxu0 0
        %1082 = vmatprep.subr.bf16.mxu0 0
        %1083 = vmatpush1.bf16.xpose.msra.mxu0 0
        %1084 = vmatprep.subr.bf16.mxu0 0
        %1085 = vmatpush1.bf16.xpose.msra.mxu0 0
        %1086 = vmatprep.subr.bf16.mxu0 0
        %1087 = vmatpush1.bf16.xpose.msra.mxu0 0
        %1088 = vmatprep.subr.bf16.mxu0 0
        %1089 = vmatpush1.bf16.xpose.msra.mxu0 0
        %1090 = vmatprep.subr.bf16.mxu0 0
        %1091 = vmatpush1.bf16.xpose.msra.mxu0 0
        %1092 = vmatprep.subr.bf16.mxu0 0
        %1093 = vmatpush1.bf16.xpose.msra.mxu0 0
        %1094 = vmatprep.subr.bf16.mxu0 0
        %1095 = vmatpush1.bf16.xpose.msra.mxu0 0
        %1096 = vmatprep.mubr.bf16.mxu0 0
        %1097 = vmatmul.mubr.bf16.gmra.mrb[0].mxu0 %v518
        %v1098 = vpop.f32.mrb[0].mxu0
        %v1099 = vadd.f32 0.0, %v1098
        %v1100 = vpop.f32.mrb[0].mxu0
        %v1101 = vpop.f32.mrb[0].mxu0
        %v1102 = vpop.f32.mrb[0].mxu0
        %1103 = vdwg.mxu0
        %v1114 = vunpack.c.l.b16 %v784
        %v1115 = vunpack.c.l.b16 %v785
        %v1116 = vunpack.c.l.b16 %v786
        %v1117 = vunpack.c.l.b16 %v787
        %v1118 = vunpack.c.l.b16 %v788
        %v1119 = vunpack.c.l.b16 %v789
        %v1120 = vunpack.c.l.b16 %v790
        %v1121 = vunpack.c.l.b16 %v791
        %v1122 = vunpack.c.l.b16 %v792
        %v1123 = vunpack.c.l.b16 %v793
        %v1124 = vpack.c.b16 %v1115, %v1114
        %v1125 = vpack.c.b16 %v1117, %v1116
        %v1126 = vpack.c.b16 %v1119, %v1118
        %v1127 = vpack.c.b16 %v1121, %v1120
        %v1128 = vpack.c.b16 %v1123, %v1122
        %1134 = vmatprep.subr.bf16.mxu0 0
        %1135 = vmatpush1.bf16.xpose.msra.mxu0 %v1124
        %1136 = vmatprep.subr.bf16.mxu0 0
        %1137 = vmatpush1.bf16.xpose.msra.mxu0 %v1125
        %1138 = vmatprep.subr.bf16.mxu0 0
        %1139 = vmatpush1.bf16.xpose.msra.mxu0 %v1126
        %1140 = vmatprep.subr.bf16.mxu0 0
        %1141 = vmatpush1.bf16.xpose.msra.mxu0 %v1127
        %1142 = vmatprep.subr.bf16.mxu0 0
        %1143 = vmatpush1.bf16.xpose.msra.mxu0 %v1128
        %1144 = vmatprep.subr.bf16.mxu0 0
        %1145 = vmatpush1.bf16.xpose.msra.mxu0 0
        %1146 = vmatprep.subr.bf16.mxu0 0
        %1147 = vmatpush1.bf16.xpose.msra.mxu0 0
        %1148 = vmatprep.subr.bf16.mxu0 0
        %1149 = vmatpush1.bf16.xpose.msra.mxu0 0
        %1150 = vmatprep.subr.bf16.mxu0 0
        %1151 = vmatpush1.bf16.xpose.msra.mxu0 0
        %1152 = vmatprep.subr.bf16.mxu0 0
        %1153 = vmatpush1.bf16.xpose.msra.mxu0 0
        %1154 = vmatprep.subr.bf16.mxu0 0
        %1155 = vmatpush1.bf16.xpose.msra.mxu0 0
        %1156 = vmatprep.subr.bf16.mxu0 0
        %1157 = vmatpush1.bf16.xpose.msra.mxu0 0
        %1158 = vmatprep.subr.bf16.mxu0 0
        %1159 = vmatpush1.bf16.xpose.msra.mxu0 0
        %1160 = vmatprep.subr.bf16.mxu0 0
        %1161 = vmatpush1.bf16.xpose.msra.mxu0 0
        %1162 = vmatprep.subr.bf16.mxu0 0
        %1163 = vmatpush1.bf16.xpose.msra.mxu0 0
        %1164 = vmatprep.subr.bf16.mxu0 0
        %1165 = vmatpush1.bf16.xpose.msra.mxu0 0
        %1166 = vmatprep.mubr.bf16.mxu0 0
        %1167 = vmatmul.mubr.bf16.gmra.mrb[0].mxu0 %v564
        %v1168 = vpop.f32.mrb[0].mxu0
        %v1169 = vadd.f32 0.0, %v1168
        %v1170 = vpop.f32.mrb[0].mxu0
        %v1171 = vpop.f32.mrb[0].mxu0
        %v1172 = vpop.f32.mrb[0].mxu0
        %1173 = vdwg.mxu0
        %v1184 = vunpack.c.l.b16 %v794
        %v1185 = vunpack.c.l.b16 %v795
        %v1186 = vunpack.c.l.b16 %v796
        %v1187 = vunpack.c.l.b16 %v797
        %v1188 = vunpack.c.l.b16 %v798
        %v1189 = vunpack.c.l.b16 %v799
        %v1190 = vunpack.c.l.b16 %v800
        %v1191 = vunpack.c.l.b16 %v801
        %v1192 = vunpack.c.l.b16 %v802
        %v1193 = vunpack.c.l.b16 %v803
        %v1194 = vpack.c.b16 %v1185, %v1184
        %v1195 = vpack.c.b16 %v1187, %v1186
        %v1196 = vpack.c.b16 %v1189, %v1188
        %v1197 = vpack.c.b16 %v1191, %v1190
        %v1198 = vpack.c.b16 %v1193, %v1192
        %1204 = vmatprep.subr.bf16.mxu0 0
        %1205 = vmatpush1.bf16.xpose.msra.mxu0 %v1194
        %1206 = vmatprep.subr.bf16.mxu0 0
        %1207 = vmatpush1.bf16.xpose.msra.mxu0 %v1195
        %1208 = vmatprep.subr.bf16.mxu0 0
        %1209 = vmatpush1.bf16.xpose.msra.mxu0 %v1196
        %1210 = vmatprep.subr.bf16.mxu0 0
        %1211 = vmatpush1.bf16.xpose.msra.mxu0 %v1197
        %1212 = vmatprep.subr.bf16.mxu0 0
        %1213 = vmatpush1.bf16.xpose.msra.mxu0 %v1198
        %1214 = vmatprep.subr.bf16.mxu0 0
        %1215 = vmatpush1.bf16.xpose.msra.mxu0 0
        %1216 = vmatprep.subr.bf16.mxu0 0
        %1217 = vmatpush1.bf16.xpose.msra.mxu0 0
        %1218 = vmatprep.subr.bf16.mxu0 0
        %1219 = vmatpush1.bf16.xpose.msra.mxu0 0
        %1220 = vmatprep.subr.bf16.mxu0 0
        %1221 = vmatpush1.bf16.xpose.msra.mxu0 0
        %1222 = vmatprep.subr.bf16.mxu0 0
        %1223 = vmatpush1.bf16.xpose.msra.mxu0 0
        %1224 = vmatprep.subr.bf16.mxu0 0
        %1225 = vmatpush1.bf16.xpose.msra.mxu0 0
        %1226 = vmatprep.subr.bf16.mxu0 0
        %1227 = vmatpush1.bf16.xpose.msra.mxu0 0
        %1228 = vmatprep.subr.bf16.mxu0 0
        %1229 = vmatpush1.bf16.xpose.msra.mxu0 0
        %1230 = vmatprep.subr.bf16.mxu0 0
        %1231 = vmatpush1.bf16.xpose.msra.mxu0 0
        %1232 = vmatprep.subr.bf16.mxu0 0
        %1233 = vmatpush1.bf16.xpose.msra.mxu0 0
        %1234 = vmatprep.subr.bf16.mxu0 0
        %1235 = vmatpush1.bf16.xpose.msra.mxu0 0
        %1236 = vmatprep.mubr.bf16.mxu0 0
        %1237 = vmatmul.mubr.bf16.gmra.mrb[0].mxu0 %v610
        %v1238 = vpop.f32.mrb[0].mxu0
        %v1239 = vadd.f32 0.0, %v1238
        %v1240 = vpop.f32.mrb[0].mxu0
        %v1241 = vpop.f32.mrb[0].mxu0
        %v1242 = vpop.f32.mrb[0].mxu0
        %1243 = vdwg.mxu0
        %v1254 = vunpack.c.l.b16 %v804
        %v1255 = vunpack.c.l.b16 %v805
        %v1256 = vunpack.c.l.b16 %v806
        %v1257 = vunpack.c.l.b16 %v807
        %v1258 = vunpack.c.l.b16 %v808
        %v1259 = vunpack.c.l.b16 %v809
        %v1260 = vunpack.c.l.b16 %v810
        %v1261 = vunpack.c.l.b16 %v811
        %v1262 = vunpack.c.l.b16 %v812
        %v1263 = vunpack.c.l.b16 %v813
        %v1264 = vpack.c.b16 %v1255, %v1254
        %v1265 = vpack.c.b16 %v1257, %v1256
        %v1266 = vpack.c.b16 %v1259, %v1258
        %v1267 = vpack.c.b16 %v1261, %v1260
        %v1268 = vpack.c.b16 %v1263, %v1262
        %1274 = vmatprep.subr.bf16.mxu0 0
        %1275 = vmatpush1.bf16.xpose.msra.mxu0 %v1264
        %1276 = vmatprep.subr.bf16.mxu0 0
        %1277 = vmatpush1.bf16.xpose.msra.mxu0 %v1265
        %1278 = vmatprep.subr.bf16.mxu0 0
        %1279 = vmatpush1.bf16.xpose.msra.mxu0 %v1266
        %1280 = vmatprep.subr.bf16.mxu0 0
        %1281 = vmatpush1.bf16.xpose.msra.mxu0 %v1267
        %1282 = vmatprep.subr.bf16.mxu0 0
        %1283 = vmatpush1.bf16.xpose.msra.mxu0 %v1268
        %1284 = vmatprep.subr.bf16.mxu0 0
        %1285 = vmatpush1.bf16.xpose.msra.mxu0 0
        %1286 = vmatprep.subr.bf16.mxu0 0
        %1287 = vmatpush1.bf16.xpose.msra.mxu0 0
        %1288 = vmatprep.subr.bf16.mxu0 0
        %1289 = vmatpush1.bf16.xpose.msra.mxu0 0
        %1290 = vmatprep.subr.bf16.mxu0 0
        %1291 = vmatpush1.bf16.xpose.msra.mxu0 0
        %1292 = vmatprep.subr.bf16.mxu0 0
        %1293 = vmatpush1.bf16.xpose.msra.mxu0 0
        %1294 = vmatprep.subr.bf16.mxu0 0
        %1295 = vmatpush1.bf16.xpose.msra.mxu0 0
        %1296 = vmatprep.subr.bf16.mxu0 0
        %1297 = vmatpush1.bf16.xpose.msra.mxu0 0
        %1298 = vmatprep.subr.bf16.mxu0 0
        %1299 = vmatpush1.bf16.xpose.msra.mxu0 0
        %1300 = vmatprep.subr.bf16.mxu0 0
        %1301 = vmatpush1.bf16.xpose.msra.mxu0 0
        %1302 = vmatprep.subr.bf16.mxu0 0
        %1303 = vmatpush1.bf16.xpose.msra.mxu0 0
        %1304 = vmatprep.subr.bf16.mxu0 0
        %1305 = vmatpush1.bf16.xpose.msra.mxu0 0
        %1306 = vmatprep.mubr.bf16.mxu0 0
        %1307 = vmatmul.mubr.bf16.gmra.mrb[0].mxu0 %v656
        %v1308 = vpop.f32.mrb[0].mxu0
        %v1309 = vadd.f32 0.0, %v1308
        %v1310 = vpop.f32.mrb[0].mxu0
        %v1311 = vpop.f32.mrb[0].mxu0
        %v1312 = vpop.f32.mrb[0].mxu0
        %1313 = vdwg.mxu0
        %v1324 = vunpack.c.l.b16 %v814
        %v1325 = vunpack.c.l.b16 %v815
        %v1326 = vunpack.c.l.b16 %v816
        %v1327 = vunpack.c.l.b16 %v817
        %v1328 = vunpack.c.l.b16 %v818
        %v1329 = vunpack.c.l.b16 %v819
        %v1330 = vunpack.c.l.b16 %v820
        %v1331 = vunpack.c.l.b16 %v821
        %v1332 = vunpack.c.l.b16 %v822
        %v1333 = vunpack.c.l.b16 %v823
        %v1334 = vpack.c.b16 %v1325, %v1324
        %v1335 = vpack.c.b16 %v1327, %v1326
        %v1336 = vpack.c.b16 %v1329, %v1328
        %v1337 = vpack.c.b16 %v1331, %v1330
        %v1338 = vpack.c.b16 %v1333, %v1332
        %1344 = vmatprep.subr.bf16.mxu0 0
        %1345 = vmatpush1.bf16.xpose.msra.mxu0 %v1334
        %1346 = vmatprep.subr.bf16.mxu0 0
        %1347 = vmatpush1.bf16.xpose.msra.mxu0 %v1335
        %1348 = vmatprep.subr.bf16.mxu0 0
        %1349 = vmatpush1.bf16.xpose.msra.mxu0 %v1336
        %1350 = vmatprep.subr.bf16.mxu0 0
        %1351 = vmatpush1.bf16.xpose.msra.mxu0 %v1337
        %1352 = vmatprep.subr.bf16.mxu0 0
        %1353 = vmatpush1.bf16.xpose.msra.mxu0 %v1338
        %1354 = vmatprep.subr.bf16.mxu0 0
        %1355 = vmatpush1.bf16.xpose.msra.mxu0 0
        %1356 = vmatprep.subr.bf16.mxu0 0
        %1357 = vmatpush1.bf16.xpose.msra.mxu0 0
        %1358 = vmatprep.subr.bf16.mxu0 0
        %1359 = vmatpush1.bf16.xpose.msra.mxu0 0
        %1360 = vmatprep.subr.bf16.mxu0 0
        %1361 = vmatpush1.bf16.xpose.msra.mxu0 0
        %1362 = vmatprep.subr.bf16.mxu0 0
        %1363 = vmatpush1.bf16.xpose.msra.mxu0 0
        %1364 = vmatprep.subr.bf16.mxu0 0
        %1365 = vmatpush1.bf16.xpose.msra.mxu0 0
        %1366 = vmatprep.subr.bf16.mxu0 0
        %1367 = vmatpush1.bf16.xpose.msra.mxu0 0
        %1368 = vmatprep.subr.bf16.mxu0 0
        %1369 = vmatpush1.bf16.xpose.msra.mxu0 0
        %1370 = vmatprep.subr.bf16.mxu0 0
        %1371 = vmatpush1.bf16.xpose.msra.mxu0 0
        %1372 = vmatprep.subr.bf16.mxu0 0
        %1373 = vmatpush1.bf16.xpose.msra.mxu0 0
        %1374 = vmatprep.subr.bf16.mxu0 0
        %1375 = vmatpush1.bf16.xpose.msra.mxu0 0
        %1376 = vmatprep.mubr.bf16.mxu0 0
        %1377 = vmatmul.mubr.bf16.gmra.mrb[0].mxu0 %v702
        %v1378 = vpop.f32.mrb[0].mxu0
        %v1379 = vadd.f32 0.0, %v1378
        %v1380 = vpop.f32.mrb[0].mxu0
        %v1381 = vpop.f32.mrb[0].mxu0
        %v1382 = vpop.f32.mrb[0].mxu0
        %1383 = vdwg.mxu0
        %v1384 = vmin.f32 %v417, 0.0
        %v1385 = vmin.f32 %v463, 0.0
        %v1386 = vmin.f32 %v509, 0.0
        %v1387 = vmin.f32 %v555, 0.0
        %v1388 = vmin.f32 %v601, 0.0
        %v1389 = vmin.f32 %v647, 0.0
        %v1390 = vmin.f32 %v693, 0.0
        %v1391 = vmin.f32 %v739, 0.0
        %v1392 = vand.u32 2147483647, %v417
        %v1393 = vand.u32 2147483647, %v463
        %v1394 = vand.u32 2147483647, %v509
        %v1395 = vand.u32 2147483647, %v555
        %v1396 = vand.u32 2147483647, %v601
        %v1397 = vand.u32 2147483647, %v647
        %v1398 = vand.u32 2147483647, %v693
        %v1399 = vand.u32 2147483647, %v739
        %v1400 = vsub.f32 0.0, %v1392
        %v1401 = vsub.f32 0.0, %v1393
        %v1402 = vsub.f32 0.0, %v1394
        %v1403 = vsub.f32 0.0, %v1395
        %v1404 = vsub.f32 0.0, %v1396
        %v1405 = vsub.f32 0.0, %v1397
        %v1406 = vsub.f32 0.0, %v1398
        %v1407 = vsub.f32 0.0, %v1399
        %v1408 = vmul.f32 %v1400, 1.442695
        %v1409 = vpow.pop %v1408
        %v1410 = vmul.f32 %v1401, 1.442695
        %v1411 = vpow.pop %v1410
        %v1412 = vmul.f32 %v1402, 1.442695
        %v1413 = vpow.pop %v1412
        %v1414 = vmul.f32 %v1403, 1.442695
        %v1415 = vpow.pop %v1414
        %v1416 = vmul.f32 %v1404, 1.442695
        %v1417 = vpow.pop %v1416
        %v1418 = vmul.f32 %v1405, 1.442695
        %v1419 = vpow.pop %v1418
        %v1420 = vmul.f32 %v1406, 1.442695
        %v1421 = vpow.pop %v1420
        %v1422 = vmul.f32 %v1407, 1.442695
        %v1423 = vpow.pop %v1422
        %v1424 = vadd.f32 %v1409, 1.0
        %v1425 = vadd.f32 %v1411, 1.0
        %v1426 = vadd.f32 %v1413, 1.0
        %v1427 = vadd.f32 %v1415, 1.0
        %v1428 = vadd.f32 %v1417, 1.0
        %v1429 = vadd.f32 %v1419, 1.0
        %v1430 = vadd.f32 %v1421, 1.0
        %v1431 = vadd.f32 %v1423, 1.0
        %v1432 = vlog2.pop %v1424
        %v1433 = vmul.f32 %v1432, 0.6931472
        %v1434 = vlog2.pop %v1425
        %v1435 = vmul.f32 %v1434, 0.6931472
        %v1436 = vlog2.pop %v1426
        %v1437 = vmul.f32 %v1436, 0.6931472
        %v1438 = vlog2.pop %v1427
        %v1439 = vmul.f32 %v1438, 0.6931472
        %v1440 = vlog2.pop %v1428
        %v1441 = vmul.f32 %v1440, 0.6931472
        %v1442 = vlog2.pop %v1429
        %v1443 = vmul.f32 %v1442, 0.6931472
        %v1444 = vlog2.pop %v1430
        %v1445 = vmul.f32 %v1444, 0.6931472
        %v1446 = vlog2.pop %v1431
        %v1447 = vmul.f32 %v1446, 0.6931472
        %v1448 = vsub.f32 %v1384, %v1433
        %v1449 = vsub.f32 %v1385, %v1435
        %v1450 = vsub.f32 %v1386, %v1437
        %v1451 = vsub.f32 %v1387, %v1439
        %v1452 = vsub.f32 %v1388, %v1441
        %v1453 = vsub.f32 %v1389, %v1443
        %v1454 = vsub.f32 %v1390, %v1445
        %v1455 = vsub.f32 %v1391, %v1447
        %v1456 = vmax.f32 %v1448, -20.723267
        %v1457 = vmax.f32 %v1449, -20.723267
        %v1458 = vmax.f32 %v1450, -20.723267
        %v1459 = vmax.f32 %v1451, -20.723267
        %v1460 = vmax.f32 %v1452, -20.723267
        %v1461 = vmax.f32 %v1453, -20.723267
        %v1462 = vmax.f32 %v1454, -20.723267
        %v1463 = vmax.f32 %v1455, -20.723267
        %v1464 = vsub.f32 0.0, %v889
        %v1465 = vsub.f32 0.0, %v959
        %v1466 = vsub.f32 0.0, %v1029
        %v1467 = vsub.f32 0.0, %v1099
        %v1468 = vsub.f32 0.0, %v1169
        %v1469 = vsub.f32 0.0, %v1239
        %v1470 = vsub.f32 0.0, %v1309
        %v1471 = vsub.f32 0.0, %v1379
        %v1472 = vmin.f32 %v1464, 0.0
        %v1473 = vmin.f32 %v1465, 0.0
        %v1474 = vmin.f32 %v1466, 0.0
        %v1475 = vmin.f32 %v1467, 0.0
        %v1476 = vmin.f32 %v1468, 0.0
        %v1477 = vmin.f32 %v1469, 0.0
        %v1478 = vmin.f32 %v1470, 0.0
        %v1479 = vmin.f32 %v1471, 0.0
        %v1480 = vand.u32 2147483647, %v1464
        %v1481 = vand.u32 2147483647, %v1465
        %v1482 = vand.u32 2147483647, %v1466
        %v1483 = vand.u32 2147483647, %v1467
        %v1484 = vand.u32 2147483647, %v1468
        %v1485 = vand.u32 2147483647, %v1469
        %v1486 = vand.u32 2147483647, %v1470
        %v1487 = vand.u32 2147483647, %v1471
        %v1488 = vsub.f32 0.0, %v1480
        %v1489 = vsub.f32 0.0, %v1481
        %v1490 = vsub.f32 0.0, %v1482
        %v1491 = vsub.f32 0.0, %v1483
        %v1492 = vsub.f32 0.0, %v1484
        %v1493 = vsub.f32 0.0, %v1485
        %v1494 = vsub.f32 0.0, %v1486
        %v1495 = vsub.f32 0.0, %v1487
        %v1496 = vmul.f32 %v1488, 1.442695
        %v1497 = vpow.pop %v1496
        %v1498 = vmul.f32 %v1489, 1.442695
        %v1499 = vpow.pop %v1498
        %v1500 = vmul.f32 %v1490, 1.442695
        %v1501 = vpow.pop %v1500
        %v1502 = vmul.f32 %v1491, 1.442695
        %v1503 = vpow.pop %v1502
        %v1504 = vmul.f32 %v1492, 1.442695
        %v1505 = vpow.pop %v1504
        %v1506 = vmul.f32 %v1493, 1.442695
        %v1507 = vpow.pop %v1506
        %v1508 = vmul.f32 %v1494, 1.442695
        %v1509 = vpow.pop %v1508
        %v1510 = vmul.f32 %v1495, 1.442695
        %v1511 = vpow.pop %v1510
        %v1512 = vadd.f32 %v1497, 1.0
        %v1513 = vadd.f32 %v1499, 1.0
        %v1514 = vadd.f32 %v1501, 1.0
        %v1515 = vadd.f32 %v1503, 1.0
        %v1516 = vadd.f32 %v1505, 1.0
        %v1517 = vadd.f32 %v1507, 1.0
        %v1518 = vadd.f32 %v1509, 1.0
        %v1519 = vadd.f32 %v1511, 1.0
        %v1520 = vlog2.pop %v1512
        %v1521 = vmul.f32 %v1520, 0.6931472
        %v1522 = vlog2.pop %v1513
        %v1523 = vmul.f32 %v1522, 0.6931472
        %v1524 = vlog2.pop %v1514
        %v1525 = vmul.f32 %v1524, 0.6931472
        %v1526 = vlog2.pop %v1515
        %v1527 = vmul.f32 %v1526, 0.6931472
        %v1528 = vlog2.pop %v1516
        %v1529 = vmul.f32 %v1528, 0.6931472
        %v1530 = vlog2.pop %v1517
        %v1531 = vmul.f32 %v1530, 0.6931472
        %v1532 = vlog2.pop %v1518
        %v1533 = vmul.f32 %v1532, 0.6931472
        %v1534 = vlog2.pop %v1519
        %v1535 = vmul.f32 %v1534, 0.6931472
        %v1536 = vsub.f32 %v1472, %v1521
        %v1537 = vsub.f32 %v1473, %v1523
        %v1538 = vsub.f32 %v1474, %v1525
        %v1539 = vsub.f32 %v1475, %v1527
        %v1540 = vsub.f32 %v1476, %v1529
        %v1541 = vsub.f32 %v1477, %v1531
        %v1542 = vsub.f32 %v1478, %v1533
        %v1543 = vsub.f32 %v1479, %v1535
        %v1544 = vmax.f32 %v1536, -20.723267
        %v1545 = vmax.f32 %v1537, -20.723267
        %v1546 = vmax.f32 %v1538, -20.723267
        %v1547 = vmax.f32 %v1539, -20.723267
        %v1548 = vmax.f32 %v1540, -20.723267
        %v1549 = vmax.f32 %v1541, -20.723267
        %v1550 = vmax.f32 %v1542, -20.723267
        %v1551 = vmax.f32 %v1543, -20.723267
        %v1560 = vrot.slane %v1457, 7
        %vm1561 = vcmask 1041409
        %v1562 = vsel %vm1561, %v1560, %v1456
        %v1563 = vrot.slane %v1458, 6
        %vm1564 = vcmask 1042434
        %v1565 = vsel %vm1564, %v1563, %v1562
        %v1566 = vrot.slane %v1459, 5
        %vm1567 = vcmask 1043459
        %v1568 = vsel %vm1567, %v1566, %v1565
        %v1569 = vrot.slane %v1460, 4
        %vm1570 = vcmask 1044484
        %v1571 = vsel %vm1570, %v1569, %v1568
        %v1572 = vrot.slane %v1461, 3
        %vm1573 = vcmask 1045509
        %v1574 = vsel %vm1573, %v1572, %v1571
        %v1575 = vrot.slane %v1462, 2
        %vm1576 = vcmask 1046534
        %v1577 = vsel %vm1576, %v1575, %v1574
        %v1578 = vrot.slane %v1463, 1
        %vm1579 = vcmask 1047559
        %v1580 = vsel %vm1579, %v1578, %v1577
        %vm1582 = vcmask 64512
        %v1583 = vsel %vm1582, %v1580, 0.0
        %1584 = vadd.xlane.f32.xlu0 %v1583
        %v1585 = vpop.xlane.xlu0 %1584
        %v1594 = vrot.slane %v1545, 7
        %v1595 = vsel %vm1561, %v1594, %v1544
        %v1596 = vrot.slane %v1546, 6
        %v1597 = vsel %vm1564, %v1596, %v1595
        %v1598 = vrot.slane %v1547, 5
        %v1599 = vsel %vm1567, %v1598, %v1597
        %v1600 = vrot.slane %v1548, 4
        %v1601 = vsel %vm1570, %v1600, %v1599
        %v1602 = vrot.slane %v1549, 3
        %v1603 = vsel %vm1573, %v1602, %v1601
        %v1604 = vrot.slane %v1550, 2
        %v1605 = vsel %vm1576, %v1604, %v1603
        %v1606 = vrot.slane %v1551, 1
        %v1607 = vsel %vm1579, %v1606, %v1605
        %vm1609 = vcmask 654336
        %v1610 = vsel %vm1609, %v1607, 0.0
        %1611 = vadd.xlane.f32.xlu0 %v1610
        %v1612 = vpop.xlane.xlu0 %1611
        %v1613 = vadd.f32 %v1585, %v1612
        %vm1614 = vcmask 7168
        %1615 = vst.msk [vmem:[%s329] sm:$0xff] %vm1614, %v1613
        %p1616 = scmp.lt.s32.totalorder %s24, 1
        %s1617 = scalar_select %p1616, %s24, 1
        %s1618 = smul.addr %s1617, 8
        %s1619 = scalar_lea.vmem %s4, %s1618
        // Predicated region
        $region53: #{tpu_custom_call.1} parent=35 // pred_check
          %p1620 = pneg %p146
        $region54: #{tpu_custom_call.1} parent=35 // pred_check_branch
          %1622 = sbr.rel (%p1620) target = $region56
        $region55: #{tpu_custom_call.1} parent=35 // pred_region
          _
        $region56: #{tpu_custom_call.1} parent=35 // pred_fallthru
          _
      $region36: #{tpu_custom_call.1} parent=5 // pred_fallthru
        _
      %p1623 = scmp.le.s32.totalorder 2, %s19
      // Predicated region
      $region57: #{tpu_custom_call.1} parent=5 // pred_check
        %p1624 = pneg %p1623
      $region58: #{tpu_custom_call.1} parent=5 // pred_check_branch
        %1626 = sbr.rel (%p1624) target = $region60
      $region59: #{tpu_custom_call.1} parent=5 // pred_region
        %s1627 = ssub.s32 %s19, 2
        // Predicated region
        $region61: #{tpu_custom_call.1} parent=59 // pred_check
          %p1628 = pneg %p152
        $region62: #{tpu_custom_call.1} parent=59 // pred_check_branch
          %1630 = sbr.rel (%p1628) target = $region64
        $region63: #{tpu_custom_call.1} parent=59 // pred_region
          %p1631 = scmp.lt.s32.totalorder %s25, 1
          %s1632 = scalar_select %p1631, %s25, 1
          %s1633 = smul.addr %s1632, 8
          %s1634 = scalar_lea.vmem %s4, %s1633
        $region64: #{tpu_custom_call.1} parent=59 // pred_fallthru
          _
      $region60: #{tpu_custom_call.1} parent=5 // pred_fallthru
        _
    $region6: #{tpu_custom_call.1} parent=1 // loop_footer
      %s23 = sadd.s32 1, %s19
    $region7: #{tpu_custom_call.1} parent=1 // loop_footer_branch
      %18 = sbr.rel target = $region3
    $region8: #{tpu_custom_call.1} parent=1 // loop_exit
      _
    %1635 = vsyncpa [#allocation3], 1
    %s1636 = scalar_lea.sflag [#allocation3], 1
    %1637 = vsyncpa %s1636, 1
    %1638 = vsyncpa [#allocation5], 1
    %s1639 = scalar_lea.sflag [#allocation5], 1
    %1640 = vsyncpa %s1639, 1
    %1641 = vsyncpa [#allocation8], 1
    %s1642 = scalar_lea.sflag [#allocation8], 1
    %1643 = vsyncpa %s1642, 1

</llo_original>
